<compile_context>
chip_gen: v6e
topology: v6e:2x2x1
jax: 0.10.0
libtpu: 0.0.40
codegen_flags: <defaults>
</compile_context>

<pallas_src>
import functools

import jax
import jax.numpy as jnp
from jax.experimental import pallas as pl
from jax.experimental.pallas import tpu as pltpu

_MXU_DTYPE = jnp.bfloat16          # MXU operands + intermediate activations
_BN_EPS = 1e-5
_VMEM_LIMIT_BYTES = 48 * 1024 * 1024   # safe for v5e/v6e (128 MiB) and v7x (64 MiB)


def _compiler_params(semantics):
    return pltpu.CompilerParams(dimension_semantics=semantics,
                                vmem_limit_bytes=_VMEM_LIMIT_BYTES)


# --------------------------- flat-padded layout ------------------------------
def _flat_dims(h, w):
    """Row pitch, padded flat length, conv output window length."""
    wp = w + 2
    return wp, (h + 3) * wp, h * wp


def _flatten_padded(x_nchw):
    """NCHW -> zero-padded, row-flattened (N, C, (H+3)*(W+2)) bf16 activation."""
    n, c, h, w = x_nchw.shape
    xp = jnp.pad(x_nchw, ((0, 0), (0, 0), (1, 2), (1, 1))).astype(_MXU_DTYPE)
    return xp.reshape(n, c, (h + 3) * (w + 2))


def _interior_mask(h, w):
    """(1, P) f32 mask: 1 at real pixels of the flat-padded layout, 0 at padding."""
    rows = jnp.arange(h + 3)
    cols = jnp.arange(w + 2)
    m = (((rows >= 1) & (rows <= h))[:, None]
         & ((cols >= 1) & (cols <= w))[None, :])
    return m.astype(jnp.float32).reshape(1, (h + 3) * (w + 2))


# ------------------------------ Pallas kernels -------------------------------
def _make_conv_kernel(n_src, affine_flags, wp, base, lout, p_total, c_out):
    """3x3 s1 p1 conv (+ optional fused input BN+ReLU per source) + bias + BN stats."""
    n_aff = sum(affine_flags)

    def kernel(*refs):
        srcs = refs[:n_src]
        ws = refs[n_src:2 * n_src]
        b_ref = refs[2 * n_src]
        mask_ref = refs[2 * n_src + 1]
        aff = refs[2 * n_src + 2: 2 * n_src + 2 + 2 * n_aff]
        y_ref, sum_ref, ssq_ref = refs[-3:]

        i = pl.program_id(0)
        acc = jnp.zeros((c_out, lout), jnp.float32)
        ai = 0
        for s in range(n_src):
            if affine_flags[s]:
                # Fused producer BatchNorm + ReLU applied while reading; the mask
                # restores the zero spatial padding (relu(shift) would leak there).
                sc_ref = aff[2 * ai]
                sh_ref = aff[2 * ai + 1]
                ai += 1
                xs = (jnp.maximum(
                    srcs[s][0].astype(jnp.float32) * sc_ref[...] + sh_ref[...],
                    0.0) * mask_ref[...]).astype(_MXU_DTYPE)

                def win(off, xs=xs):
                    return xs[:, off:off + lout]
            else:
                def win(off, ref=srcs[s]):
                    return ref[0, :, off:off + lout]

            w_all = ws[s][...]                              # (9, Cout, Cs) bf16
            for t in range(9):                              # 9 taps, static slices
                off = (t // 3) * wp + (t % 3)
                acc = acc + jnp.dot(w_all[t], win(off),
                                    preferred_element_type=jnp.float32)

        y = acc + b_ref[...]                                # (Cout, 1) bias
        # Single mask multiply: zeros the junk pad columns -> clean statistics
        # and an output that is directly consumable as a padded conv input.
        ym = y * mask_ref[:, base:base + lout]

        @pl.when(i == 0)
        def _init():
            sum_ref[...] = jnp.zeros_like(sum_ref)
            ssq_ref[...] = jnp.zeros_like(ssq_ref)

        sum_ref[...] += jnp.sum(ym, axis=1, keepdims=True)
        ssq_ref[...] += jnp.sum(ym * ym, axis=1, keepdims=True)

        y_ref[0, :, :base] = jnp.zeros((c_out, base), _MXU_DTYPE)
        y_ref[0, :, base:base + lout] = ym.astype(_MXU_DTYPE)
        y_ref[0, :, base + lout:] = jnp.zeros(
            (c_out, p_total - base - lout), _MXU_DTYPE)

    return kernel


def _make_deconv_kernel(wp_in, lout, c_out):
    """ConvTranspose2d(k=4,s=2,p=1) as 4 phase planes of 2x2 taps on the input."""
    def kernel(x_ref, w_ref, b_ref, o_ref):
        x = x_ref[0]                                        # (Cin, Pin) bf16
        w = w_ref[...]                                      # (16, Cout, Cin) bf16
        b = b_ref[...]                                      # (Cout, 1) f32
        for py in range(2):
            for px in range(2):
                acc = jnp.zeros((c_out, lout), jnp.float32)
                for a in range(2):
                    for bb in range(2):
                        off = (py + a) * wp_in + (px + bb)
                        idx = ((py * 2 + px) * 2 + a) * 2 + bb
                        acc = acc + jnp.dot(w[idx], x[:, off:off + lout],
                                            preferred_element_type=jnp.float32)
                o_ref[0, py, px] = (acc + b).astype(o_ref.dtype)
    return kernel


def _bn_apply_kernel(hv, wv, y_ref, sc_ref, sh_ref, o_ref):
    """Final BatchNorm(train stats)+ReLU; also extracts the dense interior."""
    y = y_ref[0, :, 1:hv + 1, 1:wv + 1].astype(jnp.float32)
    o_ref[0] = jnp.maximum(y * sc_ref[...] + sh_ref[...], 0.0)


# --------------------------- pallas_call wrappers ----------------------------
def _conv3x3_fused(srcs, prep, hv, wv, in_affine=None):
    """Fused 3x3 conv over one/two flat-padded sources -> (y bf16, sum, ssq)."""
    n = srcs[0].shape[0]
    wp, p, lout = _flat_dims(hv, wv)
    base = wp + 1
    c_out = prep["cout"]
    if in_affine is None:
        in_affine = [None] * len(srcs)
    affine_flags = [a is not None for a in in_affine]
    mask = _interior_mask(hv, wv)

    args, in_specs = [], []
    for s in srcs:
        args.append(s)
        in_specs.append(pl.BlockSpec((1, s.shape[1], p), lambda i: (i, 0, 0)))
    for w in prep["w"]:
        args.append(w)
        in_specs.append(pl.BlockSpec(w.shape, lambda i: (0, 0, 0)))
    args += [prep["b"], mask]
    in_specs += [pl.BlockSpec((c_out, 1), lambda i: (0, 0)),
                 pl.BlockSpec((1, p), lambda i: (0, 0))]
    for s, aff in zip(srcs, in_affine):
        if aff is not None:
            sc, sh = aff
            cs = s.shape[1]
            args += [sc, sh]
            in_specs += [pl.BlockSpec((cs, 1), lambda i: (0, 0)),
                         pl.BlockSpec((cs, 1), lambda i: (0, 0))]

    kernel = _make_conv_kernel(len(srcs), affine_flags, wp, base, lout, p, c_out)
    return pl.pallas_call(
        kernel,
        out_shape=(jax.ShapeDtypeStruct((n, c_out, p), _MXU_DTYPE),
                   jax.ShapeDtypeStruct((c_out, 1), jnp.float32),
                   jax.ShapeDtypeStruct((c_out, 1), jnp.float32)),
        grid_spec=pltpu.PrefetchScalarGridSpec(
            num_scalar_prefetch=0, grid=(n,),
            in_specs=in_specs,
            out_specs=(pl.BlockSpec((1, c_out, p), lambda i: (i, 0, 0)),
                       pl.BlockSpec((c_out, 1), lambda i: (0, 0)),
                       pl.BlockSpec((c_out, 1), lambda i: (0, 0)))),
        compiler_params=_compiler_params(("arbitrary",)),   # stats accumulate over batch
    )(*args)


def _bn_scale_shift(ysum, yssq, gamma, beta, count):
    """Training-mode BatchNorm scale/shift from per-channel sum / sum-of-squares."""
    mean = ysum[:, 0] / count
    var = jnp.maximum(yssq[:, 0] / count - mean * mean, 0.0)
    scale = gamma * jax.lax.rsqrt(var + _BN_EPS)
    shift = beta - mean * scale
    return scale.reshape(-1, 1), shift.reshape(-1, 1)


def _bn_relu_apply(y_flat, scale, shift, hv, wv):
    """Apply BN+ReLU to the flat-padded bf16 conv output, emit dense NCHW f32."""
    n, c, _ = y_flat.shape
    wp = wv + 2
    y4 = y_flat.reshape(n, c, hv + 3, wp)
    sc = scale.reshape(c, 1, 1).astype(jnp.float32)
    sh = shift.reshape(c, 1, 1).astype(jnp.float32)
    return pl.pallas_call(
        functools.partial(_bn_apply_kernel, hv, wv),
        out_shape=jax.ShapeDtypeStruct((n, c, hv, wv), jnp.float32),
        grid_spec=pltpu.PrefetchScalarGridSpec(
            num_scalar_prefetch=0, grid=(n,),
            in_specs=[pl.BlockSpec((1, c, hv + 3, wp), lambda i: (i, 0, 0, 0)),
                      pl.BlockSpec((c, 1, 1), lambda i: (0, 0, 0)),
                      pl.BlockSpec((c, 1, 1), lambda i: (0, 0, 0))],
            out_specs=pl.BlockSpec((1, c, hv, wv), lambda i: (i, 0, 0, 0))),
        compiler_params=_compiler_params(("parallel",)),
    )(y4, sc, sh)


def conv_transpose2d_s2(x_nchw, prep):
    """ConvTranspose2d(kernel=4, stride=2, padding=1), NCHW -> NCHW (bf16)."""
    n, cin, h, w = x_nchw.shape
    wp, pin, lin = _flat_dims(h, w)
    c_out = prep["cout"]
    xf = _flatten_padded(x_nchw)
    ph = pl.pallas_call(
        _make_deconv_kernel(wp, lin, c_out),
        out_shape=jax.ShapeDtypeStruct((n, 2, 2, c_out, lin), _MXU_DTYPE),
        grid_spec=pltpu.PrefetchScalarGridSpec(
            num_scalar_prefetch=0, grid=(n,),
            in_specs=[pl.BlockSpec((1, cin, pin), lambda i: (i, 0, 0)),
                      pl.BlockSpec(prep["w"].shape, lambda i: (0, 0, 0)),
                      pl.BlockSpec((c_out, 1), lambda i: (0, 0))],
            out_specs=pl.BlockSpec((1, 2, 2, c_out, lin),
                                   lambda i: (i, 0, 0, 0, 0))),
        compiler_params=_compiler_params(("parallel",)),
    )(xf, prep["w"], prep["b"])
    # TODO(synk): phase->dense pixel shuffle stays at the JAX level (bf16, small).
    h2, w2 = 2 * h, 2 * w
    ph = ph.reshape(n, 2, 2, c_out, h, wp)[..., :w]      # drop junk pad columns
    out1 = jnp.transpose(ph, (0, 3, 4, 1, 5, 2)).reshape(n, c_out, h2, w2)
    return out1


# --------------------------- parameters / packing ----------------------------
def init_unet_up_params(key, pre_c, input_c, classes=4, is_scale=True):
    """Raw parameters in PyTorch layouts (ConvTranspose2d / Conv2d / BN)."""
    convin = (pre_c + classes) if is_scale else (pre_c + pre_c)
    transout = classes if is_scale else pre_c
    ks = jax.random.split(key, 6)
    return {
        "deconv_w": 0.1 * jax.random.normal(ks[0], (input_c, transout, 4, 4), jnp.float32),
        "deconv_b": 0.1 * jax.random.normal(ks[1], (transout,), jnp.float32),
        "conv1_w": 0.1 * jax.random.normal(ks[2], (pre_c, convin, 3, 3), jnp.float32),
        "conv1_b": 0.1 * jax.random.normal(ks[3], (pre_c,), jnp.float32),
        "bn1_g": jnp.ones((pre_c,), jnp.float32),
        "bn1_b": jnp.zeros((pre_c,), jnp.float32),
        "conv2_w": 0.1 * jax.random.normal(ks[4], (pre_c, pre_c, 3, 3), jnp.float32),
        "conv2_b": 0.1 * jax.random.normal(ks[5], (pre_c,), jnp.float32),
        "bn2_g": jnp.ones((pre_c,), jnp.float32),
        "bn2_b": jnp.zeros((pre_c,), jnp.float32),
    }


def _prep_conv(w, b, g, beta, splits):
    """Conv2d weight (Cout, Cin, 3, 3) -> per-source tap-major (9, Cout, Cs) bf16."""
    cout = w.shape[0]
    ws, o = [], 0
    for cs in splits:
        wt = jnp.transpose(w[:, o:o + cs], (2, 3, 0, 1)).reshape(9, cout, cs)
        ws.append(wt.astype(_MXU_DTYPE))
        o += cs
    return {"w": ws, "b": b.reshape(cout, 1).astype(jnp.float32),
            "gamma": g.astype(jnp.float32), "beta": beta.astype(jnp.float32),
            "cout": cout}


def _prep_deconv(w, b):
    """ConvTranspose2d weight (Cin, Cout, 4, 4) -> (16, Cout, Cin) phase/tap weights."""
    cin, cout, kh, kw = w.shape
    assert (kh, kw) == (4, 4), "sub-pixel decomposition assumes kernel_size=4"
    wd = jnp.zeros((16, cout, cin), jnp.float32)
    for py in range(2):
        for px in range(2):
            for a in range(2):
                for bb in range(2):
                    idx = ((py * 2 + px) * 2 + a) * 2 + bb
                    wd = wd.at[idx].set(
                        jnp.transpose(w[:, :, 3 - (2 * a + py), 3 - (2 * bb + px)]))
    return {"w": wd.astype(_MXU_DTYPE),
            "b": b.reshape(cout, 1).astype(jnp.float32), "cout": cout}


def prepare_unet_up_params(p):
    """One-time weight re-layout / flip / split (hoisted out of the forward)."""
    transout = p["deconv_w"].shape[1]
    convin = p["conv1_w"].shape[1]
    pre_c = convin - transout
    return {
        "deconv": _prep_deconv(p["deconv_w"], p["deconv_b"]),
        "conv1": _prep_conv(p["conv1_w"], p["conv1_b"], p["bn1_g"], p["bn1_b"],
                            splits=(pre_c, transout)),
        "conv2": _prep_conv(p["conv2_w"], p["conv2_b"], p["bn2_g"], p["bn2_b"],
                            splits=(p["conv2_w"].shape[1],)),
    }


# ------------------------------ UnetUp forward -------------------------------
def unet_up_forward(x_nchw, pre_nchw, prep, add_conv=False):
    # TODO(synk): nn.Dropout (is_drop=True) not implemented; module default is_drop=False.
    n = x_nchw.shape[0]
    h2, w2 = 2 * x_nchw.shape[2], 2 * x_nchw.shape[3]
    out1 = conv_transpose2d_s2(x_nchw, prep["deconv"])       # (N, transout, 2H, 2W) bf16
    if not add_conv:
        return jnp.concatenate([pre_nchw, out1.astype(jnp.float32)], axis=1)

    # torch.cat([pre, out1], 1) is never materialized: conv1 reads the two
    # sources separately (weight split along input channels in prepare).
    pre_flat = _flatten_padded(pre_nchw)
    out1_flat = _flatten_padded(out1)
    c1, c2 = prep["conv1"], prep["conv2"]
    count = float(n * h2 * w2)

    y1, s1, q1 = _conv3x3_fused([pre_flat, out1_flat], c1, h2, w2)
    sc1, sh1 = _bn_scale_shift(s1, q1, c1["gamma"], c1["beta"], count)
    # conv2 applies conv1's BatchNorm+ReLU on the fly while reading y1.
    y2, s2, q2 = _conv3x3_fused([y1], c2, h2, w2, in_affine=[(sc1, sh1)])
    sc2, sh2 = _bn_scale_shift(s2, q2, c2["gamma"], c2["beta"], count)
    return _bn_relu_apply(y2, sc2, sh2, h2, w2)              # dense NCHW f32


if __name__ == "__main__":
    key = jax.random.PRNGKey(0)
    k1, k2, k3 = jax.random.split(key, 3)
    N, pre_c, input_c, classes, H = 2, 4, 8, 4, 16
    x = jax.random.normal(k1, (N, input_c, H, H), jnp.float32)          # encoder feat
    pre = jax.random.normal(k2, (N, pre_c, 2 * H, 2 * H), jnp.float32)  # skip feat
    raw = init_unet_up_params(k3, pre_c, input_c, classes, is_scale=True)
    prep = prepare_unet_up_params(raw)

    fwd_cat = jax.jit(lambda a, b: unet_up_forward(a, b, prep, add_conv=False))
    fwd_conv = jax.jit(lambda a, b: unet_up_forward(a, b, prep, add_conv=True))

    out_concat = fwd_cat(x, pre)    # (2, 8, 32, 32)
    out_conv = fwd_conv(x, pre)     # (2, 4, 32, 32)
    jax.block_until_ready((out_concat, out_conv))

    assert out_concat.shape == (N, pre_c + classes, 2 * H, 2 * H)
    assert out_conv.shape == (N, pre_c, 2 * H, 2 * H)
    assert bool(jnp.all(jnp.isfinite(out_concat)))
    assert bool(jnp.all(jnp.isfinite(out_conv)))
    print("KERNEL_OK")
</pallas_src>

<mosaic_0001>
module attributes {stable_mosaic.version = 11 : i64} {
  func.func @kernel(%arg0: i32, %arg1: memref<1x8x342xbf16, #tpu.memory_space<vmem>>, %arg2: memref<16x4x8xbf16, #tpu.memory_space<vmem>>, %arg3: memref<4x1xf32, #tpu.memory_space<vmem>>, %arg4: memref<1x2x2x4x288xbf16, #tpu.memory_space<vmem>>) attributes {dimension_semantics = [#tpu.dimension_semantics<parallel>], iteration_bounds = array<i64: 2>, scalar_prefetch = 0 : i64, scratch_operands = 0 : i64, tpu.core_type = #tpu.core_type<tc>, window_params = [{transform_indices = @transform_0, window_bounds = array<i64: 1, 8, 342>}, {pipeline_mode = #tpu.pipeline_mode<synchronous>, transform_indices = @transform_1, window_bounds = array<i64: 16, 4, 8>}, {pipeline_mode = #tpu.pipeline_mode<synchronous>, transform_indices = @transform_2, window_bounds = array<i64: 4, 1>}, {transform_indices = @transform_3, window_bounds = array<i64: 1, 2, 2, 4, 288>}]} {
    %c0 = arith.constant 0 : index
    %c0_0 = arith.constant 0 : index
    %c0_1 = arith.constant 0 : index
    %0 = vector.load %arg1[%c0, %c0_0, %c0_1] : memref<1x8x342xbf16, #tpu.memory_space<vmem>>, vector<1x8x342xbf16>
    %1 = vector.shape_cast %0 : vector<1x8x342xbf16> to vector<8x342xbf16>
    %c0_2 = arith.constant 0 : index
    %c0_3 = arith.constant 0 : index
    %c0_4 = arith.constant 0 : index
    %2 = vector.load %arg2[%c0_2, %c0_3, %c0_4] : memref<16x4x8xbf16, #tpu.memory_space<vmem>>, vector<16x4x8xbf16>
    %c0_5 = arith.constant 0 : index
    %c0_6 = arith.constant 0 : index
    %3 = vector.load %arg3[%c0_5, %c0_6] : memref<4x1xf32, #tpu.memory_space<vmem>>, vector<4x1xf32>
    %cst = arith.constant 0.000000e+00 : f32
    %4 = vector.broadcast %cst : f32 to vector<4x288xf32>
    %5 = vector.extract_strided_slice %2 {offsets = [0, 0, 0], sizes = [1, 4, 8], strides = [1, 1, 1]} : vector<16x4x8xbf16> to vector<1x4x8xbf16>
    %6 = vector.shape_cast %5 : vector<1x4x8xbf16> to vector<4x8xbf16>
    %7 = vector.extract_strided_slice %1 {offsets = [0, 0], sizes = [8, 288], strides = [1, 1]} : vector<8x342xbf16> to vector<8x288xbf16>
    %cst_7 = arith.constant dense<0.000000e+00> : vector<4x288xf32>
    %8 = tpu.matmul %6, %7, %cst_7 {dimension_numbers = #tpu.dot_dimension_numbers<[1], [0], [0], [1], [0, 0, 1, 1], [], []>} : vector<4x8xbf16>, vector<8x288xbf16>, vector<4x288xf32> -> vector<4x288xf32>
    %9 = arith.addf %4, %8 : vector<4x288xf32>
    %10 = vector.extract_strided_slice %2 {offsets = [1, 0, 0], sizes = [1, 4, 8], strides = [1, 1, 1]} : vector<16x4x8xbf16> to vector<1x4x8xbf16>
    %11 = vector.shape_cast %10 : vector<1x4x8xbf16> to vector<4x8xbf16>
    %12 = vector.extract_strided_slice %1 {offsets = [0, 1], sizes = [8, 288], strides = [1, 1]} : vector<8x342xbf16> to vector<8x288xbf16>
    %cst_8 = arith.constant dense<0.000000e+00> : vector<4x288xf32>
    %13 = tpu.matmul %11, %12, %cst_8 {dimension_numbers = #tpu.dot_dimension_numbers<[1], [0], [0], [1], [0, 0, 1, 1], [], []>} : vector<4x8xbf16>, vector<8x288xbf16>, vector<4x288xf32> -> vector<4x288xf32>
    %14 = arith.addf %9, %13 : vector<4x288xf32>
    %15 = vector.extract_strided_slice %2 {offsets = [2, 0, 0], sizes = [1, 4, 8], strides = [1, 1, 1]} : vector<16x4x8xbf16> to vector<1x4x8xbf16>
    %16 = vector.shape_cast %15 : vector<1x4x8xbf16> to vector<4x8xbf16>
    %17 = vector.extract_strided_slice %1 {offsets = [0, 18], sizes = [8, 288], strides = [1, 1]} : vector<8x342xbf16> to vector<8x288xbf16>
    %cst_9 = arith.constant dense<0.000000e+00> : vector<4x288xf32>
    %18 = tpu.matmul %16, %17, %cst_9 {dimension_numbers = #tpu.dot_dimension_numbers<[1], [0], [0], [1], [0, 0, 1, 1], [], []>} : vector<4x8xbf16>, vector<8x288xbf16>, vector<4x288xf32> -> vector<4x288xf32>
    %19 = arith.addf %14, %18 : vector<4x288xf32>
    %20 = vector.extract_strided_slice %2 {offsets = [3, 0, 0], sizes = [1, 4, 8], strides = [1, 1, 1]} : vector<16x4x8xbf16> to vector<1x4x8xbf16>
    %21 = vector.shape_cast %20 : vector<1x4x8xbf16> to vector<4x8xbf16>
    %22 = vector.extract_strided_slice %1 {offsets = [0, 19], sizes = [8, 288], strides = [1, 1]} : vector<8x342xbf16> to vector<8x288xbf16>
    %cst_10 = arith.constant dense<0.000000e+00> : vector<4x288xf32>
    %23 = tpu.matmul %21, %22, %cst_10 {dimension_numbers = #tpu.dot_dimension_numbers<[1], [0], [0], [1], [0, 0, 1, 1], [], []>} : vector<4x8xbf16>, vector<8x288xbf16>, vector<4x288xf32> -> vector<4x288xf32>
    %24 = arith.addf %19, %23 : vector<4x288xf32>
    %25 = vector.broadcast %3 : vector<4x1xf32> to vector<4x288xf32>
    %26 = arith.addf %24, %25 : vector<4x288xf32>
    %27 = arith.truncf %26 : vector<4x288xf32> to vector<4x288xbf16>
    %c0_11 = arith.constant 0 : index
    %c0_12 = arith.constant 0 : index
    %c0_13 = arith.constant 0 : index
    %c0_14 = arith.constant 0 : index
    %c0_15 = arith.constant 0 : index
    %28 = vector.load %arg4[%c0_11, %c0_12, %c0_13, %c0_14, %c0_15] : memref<1x2x2x4x288xbf16, #tpu.memory_space<vmem>>, vector<1x1x1x4x288xbf16>
    %29 = vector.shape_cast %28 : vector<1x1x1x4x288xbf16> to vector<4x288xbf16>
    %30 = vector.shape_cast %27 : vector<4x288xbf16> to vector<1x1x1x4x288xbf16>
    tpu.vector_store %arg4[%c0_11, %c0_12, %c0_13, %c0_14, %c0_15], %30 {strides = array<i32>} : memref<1x2x2x4x288xbf16, #tpu.memory_space<vmem>>, vector<1x1x1x4x288xbf16>,
    %cst_16 = arith.constant 0.000000e+00 : f32
    %31 = vector.broadcast %cst_16 : f32 to vector<4x288xf32>
    %32 = vector.extract_strided_slice %2 {offsets = [4, 0, 0], sizes = [1, 4, 8], strides = [1, 1, 1]} : vector<16x4x8xbf16> to vector<1x4x8xbf16>
    %33 = vector.shape_cast %32 : vector<1x4x8xbf16> to vector<4x8xbf16>
    %34 = vector.extract_strided_slice %1 {offsets = [0, 1], sizes = [8, 288], strides = [1, 1]} : vector<8x342xbf16> to vector<8x288xbf16>
    %cst_17 = arith.constant dense<0.000000e+00> : vector<4x288xf32>
    %35 = tpu.matmul %33, %34, %cst_17 {dimension_numbers = #tpu.dot_dimension_numbers<[1], [0], [0], [1], [0, 0, 1, 1], [], []>} : vector<4x8xbf16>, vector<8x288xbf16>, vector<4x288xf32> -> vector<4x288xf32>
    %36 = arith.addf %31, %35 : vector<4x288xf32>
    %37 = vector.extract_strided_slice %2 {offsets = [5, 0, 0], sizes = [1, 4, 8], strides = [1, 1, 1]} : vector<16x4x8xbf16> to vector<1x4x8xbf16>
    %38 = vector.shape_cast %37 : vector<1x4x8xbf16> to vector<4x8xbf16>
    %39 = vector.extract_strided_slice %1 {offsets = [0, 2], sizes = [8, 288], strides = [1, 1]} : vector<8x342xbf16> to vector<8x288xbf16>
    %cst_18 = arith.constant dense<0.000000e+00> : vector<4x288xf32>
    %40 = tpu.matmul %38, %39, %cst_18 {dimension_numbers = #tpu.dot_dimension_numbers<[1], [0], [0], [1], [0, 0, 1, 1], [], []>} : vector<4x8xbf16>, vector<8x288xbf16>, vector<4x288xf32> -> vector<4x288xf32>
    %41 = arith.addf %36, %40 : vector<4x288xf32>
    %42 = vector.extract_strided_slice %2 {offsets = [6, 0, 0], sizes = [1, 4, 8], strides = [1, 1, 1]} : vector<16x4x8xbf16> to vector<1x4x8xbf16>
    %43 = vector.shape_cast %42 : vector<1x4x8xbf16> to vector<4x8xbf16>
    %44 = vector.extract_strided_slice %1 {offsets = [0, 19], sizes = [8, 288], strides = [1, 1]} : vector<8x342xbf16> to vector<8x288xbf16>
    %cst_19 = arith.constant dense<0.000000e+00> : vector<4x288xf32>
    %45 = tpu.matmul %43, %44, %cst_19 {dimension_numbers = #tpu.dot_dimension_numbers<[1], [0], [0], [1], [0, 0, 1, 1], [], []>} : vector<4x8xbf16>, vector<8x288xbf16>, vector<4x288xf32> -> vector<4x288xf32>
    %46 = arith.addf %41, %45 : vector<4x288xf32>
    %47 = vector.extract_strided_slice %2 {offsets = [7, 0, 0], sizes = [1, 4, 8], strides = [1, 1, 1]} : vector<16x4x8xbf16> to vector<1x4x8xbf16>
    %48 = vector.shape_cast %47 : vector<1x4x8xbf16> to vector<4x8xbf16>
    %49 = vector.extract_strided_slice %1 {offsets = [0, 20], sizes = [8, 288], strides = [1, 1]} : vector<8x342xbf16> to vector<8x288xbf16>
    %cst_20 = arith.constant dense<0.000000e+00> : vector<4x288xf32>
    %50 = tpu.matmul %48, %49, %cst_20 {dimension_numbers = #tpu.dot_dimension_numbers<[1], [0], [0], [1], [0, 0, 1, 1], [], []>} : vector<4x8xbf16>, vector<8x288xbf16>, vector<4x288xf32> -> vector<4x288xf32>
    %51 = arith.addf %46, %50 : vector<4x288xf32>
    %52 = vector.broadcast %3 : vector<4x1xf32> to vector<4x288xf32>
    %53 = arith.addf %51, %52 : vector<4x288xf32>
    %54 = arith.truncf %53 : vector<4x288xf32> to vector<4x288xbf16>
    %c0_21 = arith.constant 0 : index
    %c0_22 = arith.constant 0 : index
    %c1 = arith.constant 1 : index
    %c0_23 = arith.constant 0 : index
    %c0_24 = arith.constant 0 : index
    %55 = vector.load %arg4[%c0_21, %c0_22, %c1, %c0_23, %c0_24] : memref<1x2x2x4x288xbf16, #tpu.memory_space<vmem>>, vector<1x1x1x4x288xbf16>
    %56 = vector.shape_cast %55 : vector<1x1x1x4x288xbf16> to vector<4x288xbf16>
    %57 = vector.shape_cast %54 : vector<4x288xbf16> to vector<1x1x1x4x288xbf16>
    tpu.vector_store %arg4[%c0_21, %c0_22, %c1, %c0_23, %c0_24], %57 {strides = array<i32>} : memref<1x2x2x4x288xbf16, #tpu.memory_space<vmem>>, vector<1x1x1x4x288xbf16>,
    %cst_25 = arith.constant 0.000000e+00 : f32
    %58 = vector.broadcast %cst_25 : f32 to vector<4x288xf32>
    %59 = vector.extract_strided_slice %2 {offsets = [8, 0, 0], sizes = [1, 4, 8], strides = [1, 1, 1]} : vector<16x4x8xbf16> to vector<1x4x8xbf16>
    %60 = vector.shape_cast %59 : vector<1x4x8xbf16> to vector<4x8xbf16>
    %61 = vector.extract_strided_slice %1 {offsets = [0, 18], sizes = [8, 288], strides = [1, 1]} : vector<8x342xbf16> to vector<8x288xbf16>
    %cst_26 = arith.constant dense<0.000000e+00> : vector<4x288xf32>
    %62 = tpu.matmul %60, %61, %cst_26 {dimension_numbers = #tpu.dot_dimension_numbers<[1], [0], [0], [1], [0, 0, 1, 1], [], []>} : vector<4x8xbf16>, vector<8x288xbf16>, vector<4x288xf32> -> vector<4x288xf32>
    %63 = arith.addf %58, %62 : vector<4x288xf32>
    %64 = vector.extract_strided_slice %2 {offsets = [9, 0, 0], sizes = [1, 4, 8], strides = [1, 1, 1]} : vector<16x4x8xbf16> to vector<1x4x8xbf16>
    %65 = vector.shape_cast %64 : vector<1x4x8xbf16> to vector<4x8xbf16>
    %66 = vector.extract_strided_slice %1 {offsets = [0, 19], sizes = [8, 288], strides = [1, 1]} : vector<8x342xbf16> to vector<8x288xbf16>
    %cst_27 = arith.constant dense<0.000000e+00> : vector<4x288xf32>
    %67 = tpu.matmul %65, %66, %cst_27 {dimension_numbers = #tpu.dot_dimension_numbers<[1], [0], [0], [1], [0, 0, 1, 1], [], []>} : vector<4x8xbf16>, vector<8x288xbf16>, vector<4x288xf32> -> vector<4x288xf32>
    %68 = arith.addf %63, %67 : vector<4x288xf32>
    %69 = vector.extract_strided_slice %2 {offsets = [10, 0, 0], sizes = [1, 4, 8], strides = [1, 1, 1]} : vector<16x4x8xbf16> to vector<1x4x8xbf16>
    %70 = vector.shape_cast %69 : vector<1x4x8xbf16> to vector<4x8xbf16>
    %71 = vector.extract_strided_slice %1 {offsets = [0, 36], sizes = [8, 288], strides = [1, 1]} : vector<8x342xbf16> to vector<8x288xbf16>
    %cst_28 = arith.constant dense<0.000000e+00> : vector<4x288xf32>
    %72 = tpu.matmul %70, %71, %cst_28 {dimension_numbers = #tpu.dot_dimension_numbers<[1], [0], [0], [1], [0, 0, 1, 1], [], []>} : vector<4x8xbf16>, vector<8x288xbf16>, vector<4x288xf32> -> vector<4x288xf32>
    %73 = arith.addf %68, %72 : vector<4x288xf32>
    %74 = vector.extract_strided_slice %2 {offsets = [11, 0, 0], sizes = [1, 4, 8], strides = [1, 1, 1]} : vector<16x4x8xbf16> to vector<1x4x8xbf16>
    %75 = vector.shape_cast %74 : vector<1x4x8xbf16> to vector<4x8xbf16>
    %76 = vector.extract_strided_slice %1 {offsets = [0, 37], sizes = [8, 288], strides = [1, 1]} : vector<8x342xbf16> to vector<8x288xbf16>
    %cst_29 = arith.constant dense<0.000000e+00> : vector<4x288xf32>
    %77 = tpu.matmul %75, %76, %cst_29 {dimension_numbers = #tpu.dot_dimension_numbers<[1], [0], [0], [1], [0, 0, 1, 1], [], []>} : vector<4x8xbf16>, vector<8x288xbf16>, vector<4x288xf32> -> vector<4x288xf32>
    %78 = arith.addf %73, %77 : vector<4x288xf32>
    %79 = vector.broadcast %3 : vector<4x1xf32> to vector<4x288xf32>
    %80 = arith.addf %78, %79 : vector<4x288xf32>
    %81 = arith.truncf %80 : vector<4x288xf32> to vector<4x288xbf16>
    %c0_30 = arith.constant 0 : index
    %c1_31 = arith.constant 1 : index
    %c0_32 = arith.constant 0 : index
    %c0_33 = arith.constant 0 : index
    %c0_34 = arith.constant 0 : index
    %82 = vector.load %arg4[%c0_30, %c1_31, %c0_32, %c0_33, %c0_34] : memref<1x2x2x4x288xbf16, #tpu.memory_space<vmem>>, vector<1x1x1x4x288xbf16>
    %83 = vector.shape_cast %82 : vector<1x1x1x4x288xbf16> to vector<4x288xbf16>
    %84 = vector.shape_cast %81 : vector<4x288xbf16> to vector<1x1x1x4x288xbf16>
    tpu.vector_store %arg4[%c0_30, %c1_31, %c0_32, %c0_33, %c0_34], %84 {strides = array<i32>} : memref<1x2x2x4x288xbf16, #tpu.memory_space<vmem>>, vector<1x1x1x4x288xbf16>,
    %cst_35 = arith.constant 0.000000e+00 : f32
    %85 = vector.broadcast %cst_35 : f32 to vector<4x288xf32>
    %86 = vector.extract_strided_slice %2 {offsets = [12, 0, 0], sizes = [1, 4, 8], strides = [1, 1, 1]} : vector<16x4x8xbf16> to vector<1x4x8xbf16>
    %87 = vector.shape_cast %86 : vector<1x4x8xbf16> to vector<4x8xbf16>
    %88 = vector.extract_strided_slice %1 {offsets = [0, 19], sizes = [8, 288], strides = [1, 1]} : vector<8x342xbf16> to vector<8x288xbf16>
    %cst_36 = arith.constant dense<0.000000e+00> : vector<4x288xf32>
    %89 = tpu.matmul %87, %88, %cst_36 {dimension_numbers = #tpu.dot_dimension_numbers<[1], [0], [0], [1], [0, 0, 1, 1], [], []>} : vector<4x8xbf16>, vector<8x288xbf16>, vector<4x288xf32> -> vector<4x288xf32>
    %90 = arith.addf %85, %89 : vector<4x288xf32>
    %91 = vector.extract_strided_slice %2 {offsets = [13, 0, 0], sizes = [1, 4, 8], strides = [1, 1, 1]} : vector<16x4x8xbf16> to vector<1x4x8xbf16>
    %92 = vector.shape_cast %91 : vector<1x4x8xbf16> to vector<4x8xbf16>
    %93 = vector.extract_strided_slice %1 {offsets = [0, 20], sizes = [8, 288], strides = [1, 1]} : vector<8x342xbf16> to vector<8x288xbf16>
    %cst_37 = arith.constant dense<0.000000e+00> : vector<4x288xf32>
    %94 = tpu.matmul %92, %93, %cst_37 {dimension_numbers = #tpu.dot_dimension_numbers<[1], [0], [0], [1], [0, 0, 1, 1], [], []>} : vector<4x8xbf16>, vector<8x288xbf16>, vector<4x288xf32> -> vector<4x288xf32>
    %95 = arith.addf %90, %94 : vector<4x288xf32>
    %96 = vector.extract_strided_slice %2 {offsets = [14, 0, 0], sizes = [1, 4, 8], strides = [1, 1, 1]} : vector<16x4x8xbf16> to vector<1x4x8xbf16>
    %97 = vector.shape_cast %96 : vector<1x4x8xbf16> to vector<4x8xbf16>
    %98 = vector.extract_strided_slice %1 {offsets = [0, 37], sizes = [8, 288], strides = [1, 1]} : vector<8x342xbf16> to vector<8x288xbf16>
    %cst_38 = arith.constant dense<0.000000e+00> : vector<4x288xf32>
    %99 = tpu.matmul %97, %98, %cst_38 {dimension_numbers = #tpu.dot_dimension_numbers<[1], [0], [0], [1], [0, 0, 1, 1], [], []>} : vector<4x8xbf16>, vector<8x288xbf16>, vector<4x288xf32> -> vector<4x288xf32>
    %100 = arith.addf %95, %99 : vector<4x288xf32>
    %101 = vector.extract_strided_slice %2 {offsets = [15, 0, 0], sizes = [1, 4, 8], strides = [1, 1, 1]} : vector<16x4x8xbf16> to vector<1x4x8xbf16>
    %102 = vector.shape_cast %101 : vector<1x4x8xbf16> to vector<4x8xbf16>
    %103 = vector.extract_strided_slice %1 {offsets = [0, 38], sizes = [8, 288], strides = [1, 1]} : vector<8x342xbf16> to vector<8x288xbf16>
    %cst_39 = arith.constant dense<0.000000e+00> : vector<4x288xf32>
    %104 = tpu.matmul %102, %103, %cst_39 {dimension_numbers = #tpu.dot_dimension_numbers<[1], [0], [0], [1], [0, 0, 1, 1], [], []>} : vector<4x8xbf16>, vector<8x288xbf16>, vector<4x288xf32> -> vector<4x288xf32>
    %105 = arith.addf %100, %104 : vector<4x288xf32>
    %106 = vector.broadcast %3 : vector<4x1xf32> to vector<4x288xf32>
    %107 = arith.addf %105, %106 : vector<4x288xf32>
    %108 = arith.truncf %107 : vector<4x288xf32> to vector<4x288xbf16>
    %c0_40 = arith.constant 0 : index
    %c1_41 = arith.constant 1 : index
    %c1_42 = arith.constant 1 : index
    %c0_43 = arith.constant 0 : index
    %c0_44 = arith.constant 0 : index
    %109 = vector.load %arg4[%c0_40, %c1_41, %c1_42, %c0_43, %c0_44] : memref<1x2x2x4x288xbf16, #tpu.memory_space<vmem>>, vector<1x1x1x4x288xbf16>
    %110 = vector.shape_cast %109 : vector<1x1x1x4x288xbf16> to vector<4x288xbf16>
    %111 = vector.shape_cast %108 : vector<4x288xbf16> to vector<1x1x1x4x288xbf16>
    tpu.vector_store %arg4[%c0_40, %c1_41, %c1_42, %c0_43, %c0_44], %111 {strides = array<i32>} : memref<1x2x2x4x288xbf16, #tpu.memory_space<vmem>>, vector<1x1x1x4x288xbf16>,
    return
  }
  func.func @transform_0(%arg0: i32) -> (i32, i32, i32) {
    %c0_i32 = arith.constant 0 : i32
    %c0_i32_0 = arith.constant 0 : i32
    %c0_i32_1 = arith.constant 0 : i32
    return %arg0, %c0_i32, %c0_i32_0 : i32, i32, i32
  }
  func.func @transform_1(%arg0: i32) -> (i32, i32, i32) {
    %c0_i32 = arith.constant 0 : i32
    %c0_i32_0 = arith.constant 0 : i32
    %c0_i32_1 = arith.constant 0 : i32
    %c0_i32_2 = arith.constant 0 : i32
    return %c0_i32, %c0_i32_0, %c0_i32_1 : i32, i32, i32
  }
  func.func @transform_2(%arg0: i32) -> (i32, i32) {
    %c0_i32 = arith.constant 0 : i32
    %c0_i32_0 = arith.constant 0 : i32
    %c0_i32_1 = arith.constant 0 : i32
    return %c0_i32, %c0_i32_0 : i32, i32
  }
  func.func @transform_3(%arg0: i32) -> (i32, i32, i32, i32, i32) {
    %c0_i32 = arith.constant 0 : i32
    %c0_i32_0 = arith.constant 0 : i32
    %c0_i32_1 = arith.constant 0 : i32
    %c0_i32_2 = arith.constant 0 : i32
    %c0_i32_3 = arith.constant 0 : i32
    return %arg0, %c0_i32, %c0_i32_0, %c0_i32_1, %c0_i32_2 : i32, i32, i32, i32, i32
  }
}

</mosaic_0001>

<llo_original>
// kernel: _lambda_.1
$region0: #{_lambda_.1}
  #allocation0 [shape = 'u32[]', space=smem, size = 0x4, offset = 0x4, fixed_abs, tag = 'smem constant byte address 0x4 - core index']
  #allocation1 [shape = 'u32[144,128]{1,0:T(1,128)}', space=vmem, size = 0x12000, scoped, tag = 'internal scratch']
  %s0 = inlined_call_operand.vmem [shape: bf16[2,8,342], index: 0, kind: input, shape index: {}]
  %s1 = inlined_call_operand.vmem [shape: bf16[16,4,8], index: 1, kind: input, shape index: {}]
  %s2 = inlined_call_operand.vmem [shape: f32[4,1], index: 2, kind: input, shape index: {}]
  %s3 = inlined_call_operand.vmem [shape: bf16[2,2,2,4,288], index: 3, kind: output, shape index: {}]
  %s4 = sld [smem:[#allocation0]]
  $region45: #{_lambda_.1} parent=0
    _
  %s6 = ssub.s32 1, %s4
  %s7 = scalar_select 0, %s6, %s4
  loop: start=0, step=1, limit=4
  $region2: #{_lambda_.1} parent=0 // loop_pre_header
    _
  $region3: #{_lambda_.1} parent=0 // loop_header
    %s9 = sphi 0, %s13
    %p10 = scmp.ge.s32.totalorder %s9, 4
    %s19 = sphi 0, %s21
    %s22 = sphi 0, %s19
    %s23 = sphi 0, %s22
    %s39 = sphi 0, %s23
    %s43 = sphi 0, %s43
    %s45 = sphi 0, %s43
    %s46 = sphi 0, %s45
    %s60 = sphi 0, %s46
    %s64 = sphi 0, %s64
    %s66 = sphi 0, %s64
    %s67 = sphi 0, %s66
    %s81 = sphi 0, %s67
    %s87 = sphi 0, %s89
    %s90 = sphi 0, %s87
    %s91 = sphi 0, %s90
    %s107 = sphi 0, %s91
  $region4: #{_lambda_.1} parent=0 // loop_header_branch
    %12 = sbr.rel (%p10) target = $region8
  $region5: #{_lambda_.1} parent=0 // loop_body
    %s14 = ssub.s32 %s9, 1
    %s15 = ssub.s32 %s9, 2
    %s16 = sadd.s32 %s9, 1
    %s17 = ssub.s32 %s9, %s16
    %p18 = scmp.eq.s32.totalorder %s17, 0
    %s20 = sadd.s32 %s19, 1
    %s21 = scalar_select %p18, %s19, %s20
    %p24 = pneg %p18
    %p25 = scmp.eq.s32.totalorder %s9, 1
    %p26 = por %p24, %p25
    %p27 = scmp.ne.s32.totalorder %s19, %s22
    %p28 = scmp.eq.s32.totalorder %s9, 0
    %p29 = por %p27, %p28
    %p30 = scmp.ne.s32.totalorder %s19, %s22
    %p31 = scmp.eq.s32.totalorder %s14, 1
    %p32 = por %p30, %p31
    %p33 = scmp.ne.s32.totalorder %s22, %s23
    %p34 = scmp.eq.s32.totalorder %s14, 0
    %p35 = por %p33, %p34
    %p36 = scmp.ne.s32.totalorder %s22, %s23
    %p37 = scmp.eq.s32.totalorder %s15, 1
    %p38 = por %p36, %p37
    %p40 = scmp.ne.s32.totalorder %s23, %s39
    %p41 = scmp.eq.s32.totalorder %s15, 0
    %p42 = por %p40, %p41
    %s44 = sadd.s32 %s43, 1
    %p47 = scmp.eq.s32.totalorder %s9, 1
    %p48 = scmp.ne.s32.totalorder %s43, %s45
    %p49 = scmp.eq.s32.totalorder %s9, 0
    %p50 = por %p48, %p49
    %p51 = scmp.ne.s32.totalorder %s43, %s45
    %p52 = scmp.eq.s32.totalorder %s14, 1
    %p53 = por %p51, %p52
    %p54 = scmp.ne.s32.totalorder %s45, %s46
    %p55 = scmp.eq.s32.totalorder %s14, 0
    %p56 = por %p54, %p55
    %p57 = scmp.ne.s32.totalorder %s45, %s46
    %p58 = scmp.eq.s32.totalorder %s15, 1
    %p59 = por %p57, %p58
    %p61 = scmp.ne.s32.totalorder %s46, %s60
    %p62 = scmp.eq.s32.totalorder %s15, 0
    %p63 = por %p61, %p62
    %s65 = sadd.s32 %s64, 1
    %p68 = scmp.eq.s32.totalorder %s9, 1
    %p69 = scmp.ne.s32.totalorder %s64, %s66
    %p70 = scmp.eq.s32.totalorder %s9, 0
    %p71 = por %p69, %p70
    %p72 = scmp.ne.s32.totalorder %s64, %s66
    %p73 = scmp.eq.s32.totalorder %s14, 1
    %p74 = por %p72, %p73
    %p75 = scmp.ne.s32.totalorder %s66, %s67
    %p76 = scmp.eq.s32.totalorder %s14, 0
    %p77 = por %p75, %p76
    %p78 = scmp.ne.s32.totalorder %s66, %s67
    %p79 = scmp.eq.s32.totalorder %s15, 1
    %p80 = por %p78, %p79
    %p82 = scmp.ne.s32.totalorder %s67, %s81
    %p83 = scmp.eq.s32.totalorder %s15, 0
    %p84 = por %p82, %p83
    %s85 = ssub.s32 %s9, %s16
    %p86 = scmp.eq.s32.totalorder %s85, 0
    %s88 = sadd.s32 %s87, 1
    %s89 = scalar_select %p86, %s87, %s88
    %p92 = pneg %p86
    %p93 = scmp.eq.s32.totalorder %s9, 1
    %p94 = por %p92, %p93
    %p95 = scmp.ne.s32.totalorder %s87, %s90
    %p96 = scmp.eq.s32.totalorder %s9, 0
    %p97 = por %p95, %p96
    %p98 = scmp.ne.s32.totalorder %s87, %s90
    %p99 = scmp.eq.s32.totalorder %s14, 1
    %p100 = por %p98, %p99
    %p101 = scmp.ne.s32.totalorder %s90, %s91
    %p102 = scmp.eq.s32.totalorder %s14, 0
    %p103 = por %p101, %p102
    %p104 = scmp.ne.s32.totalorder %s90, %s91
    %p105 = scmp.eq.s32.totalorder %s15, 1
    %p106 = por %p104, %p105
    %p108 = scmp.ne.s32.totalorder %s91, %s107
    %p109 = scmp.eq.s32.totalorder %s15, 0
    %p110 = por %p108, %p109
    %p111 = scmp.le.s32.totalorder 1, %s9
    %p112 = scmp.lt.s32.totalorder %s9, 3
    %p113 = pnand %p111, %p112
    %p114 = pneg %p113
    // Predicated region
    $region9: #{_lambda_.1} parent=5 // pred_check
      _
    $region10: #{_lambda_.1} parent=5 // pred_check_branch
      %116 = sbr.rel (%p113) target = $region12
    $region11: #{_lambda_.1} parent=5 // pred_region
      %s117 = ssub.s32 %s9, 1
      // Predicated region
      $region13: #{_lambda_.1} parent=11 // pred_check
        %p118 = pneg %p56
      $region14: #{_lambda_.1} parent=11 // pred_check_branch
        %120 = sbr.rel (%p118) target = $region16
      $region15: #{_lambda_.1} parent=11 // pred_region
        _
      $region16: #{_lambda_.1} parent=11 // pred_fallthru
        _
      // Predicated region
      $region17: #{_lambda_.1} parent=11 // pred_check
        %p121 = pneg %p77
      $region18: #{_lambda_.1} parent=11 // pred_check_branch
        %123 = sbr.rel (%p121) target = $region20
      $region19: #{_lambda_.1} parent=11 // pred_region
        _
      $region20: #{_lambda_.1} parent=11 // pred_fallthru
        _
    $region12: #{_lambda_.1} parent=5 // pred_fallthru
      _
    %p124 = scmp.lt.s32.totalorder %s9, 2
    // Predicated region
    $region21: #{_lambda_.1} parent=5 // pred_check
      %p125 = pneg %p124
    $region22: #{_lambda_.1} parent=5 // pred_check_branch
      %127 = sbr.rel (%p125) target = $region24
    $region23: #{_lambda_.1} parent=5 // pred_region
      // Predicated region
      $region25: #{_lambda_.1} parent=23 // pred_check
        %p128 = pneg %p29
      $region26: #{_lambda_.1} parent=23 // pred_check_branch
        %130 = sbr.rel (%p128) target = $region28
      $region27: #{_lambda_.1} parent=23 // pred_region
        %p131 = scmp.lt.s32.totalorder %s9, 1
        %s132 = scalar_select %p131, %s9, 1
        %s133 = smul.addr %s132, 3
        %s134 = smul.addr %s133, 4
        %s135 = scalar_lea.vmem %s0, %s134
      $region28: #{_lambda_.1} parent=23 // pred_fallthru
        _
    $region24: #{_lambda_.1} parent=5 // pred_fallthru
      _
    %p136 = scmp.le.s32.totalorder 1, %s9
    %p137 = scmp.lt.s32.totalorder %s9, 3
    %p138 = pnand %p136, %p137
    %p139 = pneg %p138
    // Predicated region
    $region29: #{_lambda_.1} parent=5 // pred_check
      _
    $region30: #{_lambda_.1} parent=5 // pred_check_branch
      %141 = sbr.rel (%p138) target = $region32
    $region31: #{_lambda_.1} parent=5 // pred_region
      %s142 = ssub.s32 %s9, 1
      %p143 = scmp.lt.s32.totalorder %s14, 1
      %s144 = scalar_select %p143, %s14, 1
      %s145 = smul.addr %s144, 3
      %s146 = smul.addr %s145, 4
      %s147 = scalar_lea.vmem %s0, %s146
      %p148 = pneg %p35
      %p149 = pneg %p32
      %p150 = pneg %p56
      %p151 = pneg %p53
      %p152 = pneg %p77
      %p153 = pneg %p74
      %p154 = pneg %p103
      %p155 = pneg %p100
      %p156 = scmp.lt.s32.totalorder %s14, 1
      %s157 = scalar_select %p156, %s14, 1
      %s158 = smul.addr %s157, 12
      %s159 = smul.addr %s158, 2
      %s160 = scalar_lea.vmem %s3, %s159
      %p161 = scmp.lt.s32.totalorder %s14, 1
      %s162 = scalar_select %p161, %s14, 1
      %s163 = smul.addr %s162, 3
      %s164 = smul.addr %s163, 4
      %s165 = scalar_lea.vmem %s0, %s164
      %p166 = scmp.lt.s32.totalorder %s14, 1
      %s167 = scalar_select %p166, %s14, 1
      %s168 = smul.addr %s167, 12
      %s169 = smul.addr %s168, 2
      %s170 = scalar_lea.vmem %s3, %s169
      %v172 = vld [vmem:[%s165] sm:$0xff]
      %v173 = vld [vmem:[%s165 + $0x8] sm:$0xf]
      %v174 = vld [vmem:[%s1] sm:$0x3]
      %v175 = vld [vmem:[%s1 + $0x2] sm:$0x3]
      %v176 = vld [vmem:[%s1 + $0x4] sm:$0x3]
      %v177 = vld [vmem:[%s1 + $0x6] sm:$0x3]
      %v178 = vld [vmem:[%s1 + $0x8] sm:$0x3]
      %v179 = vld [vmem:[%s1 + $0xa] sm:$0x3]
      %v180 = vld [vmem:[%s1 + $0xc] sm:$0x3]
      %v181 = vld [vmem:[%s1 + $0xe] sm:$0x3]
      %v182 = vld [vmem:[%s1 + $0x10] sm:$0x3]
      %v183 = vld [vmem:[%s1 + $0x12] sm:$0x3]
      %v184 = vld [vmem:[%s1 + $0x14] sm:$0x3]
      %v185 = vld [vmem:[%s1 + $0x16] sm:$0x3]
      %v186 = vld [vmem:[%s1 + $0x18] sm:$0x3]
      %v187 = vld [vmem:[%s1 + $0x1a] sm:$0x3]
      %v188 = vld [vmem:[%s1 + $0x1c] sm:$0x3]
      %v189 = vld [vmem:[%s1 + $0x1e] sm:$0x3]
      %v190 = vld [vmem:[%s2] sm:$0xf]
      %v193 = vunpack.c.l.b16 %v172
      %v194 = vunpack.c.h.b16 %v172
      %v195 = vunpack.c.l.b16 %v173
      %v196 = vpack.c.b16 %v193, %v193
      %v197 = vpack.c.b16 %v194, %v194
      %v198 = vpack.c.b16 %v195, %v195
      %199 = vrot.lane.b32.xlu0 %v196, 127
      %v200 = vpop.permute.xlu0 %199
      %201 = vrot.lane.b32.xlu0 %v197, 127
      %v202 = vpop.permute.xlu0 %201
      %203 = vrot.lane.b32.xlu0 %v198, 127
      %v204 = vpop.permute.xlu0 %203
      %vm205 = vcmask 1039360
      %v206 = vsel %vm205, %v200, %v202
      %v207 = vsel %vm205, %v202, %v204
      %vm208 = vcmask 64512
      %v210 = vsel %vm208, %v175, 0
      %vm212 = vcmask 1043456
      %v214 = vsel %vm212, %v206, 0
      %v217 = vsel %vm212, %v207, 0
      %v220 = vsel %vm212, %v204, 0
      %222 = vmatprep.subr.bf16.mxu0 0
      %223 = vmatpush1.bf16.msra.mxu0 0
      %224 = vmatprep.subr.bf16.mxu0 0
      %225 = vmatpush1.bf16.msra.mxu0 0
      %226 = vmatprep.subr.bf16.mxu0 0
      %227 = vmatpush1.bf16.msra.mxu0 0
      %228 = vmatprep.subr.bf16.mxu0 0
      %229 = vmatpush1.bf16.msra.mxu0 0
      %230 = vmatprep.subr.bf16.mxu0 0
      %231 = vmatpush1.bf16.msra.mxu0 0
      %232 = vmatprep.subr.bf16.mxu0 0
      %233 = vmatpush1.bf16.msra.mxu0 0
      %234 = vmatprep.subr.bf16.mxu0 0
      %235 = vmatpush1.bf16.msra.mxu0 0
      %236 = vmatprep.subr.bf16.mxu0 %v217
      %237 = vmatpush1.bf16.msra.mxu0 %v214
      %238 = vmatprep.subr.bf16.mxu0 0
      %239 = vmatpush2.bf16.msra.mxu0 0
      %240 = vmatprep.subr.bf16.mxu0 0
      %241 = vmatpush2.bf16.msra.mxu0 0
      %242 = vmatprep.subr.bf16.mxu0 0
      %243 = vmatpush2.bf16.msra.mxu0 0
      %244 = vmatprep.subr.bf16.mxu0 0
      %245 = vmatpush2.bf16.msra.mxu0 0
      %246 = vmatprep.subr.bf16.mxu0 0
      %247 = vmatpush2.bf16.msra.mxu0 0
      %248 = vmatprep.subr.bf16.mxu0 0
      %249 = vmatpush2.bf16.msra.mxu0 0
      %250 = vmatprep.subr.bf16.mxu0 0
      %251 = vmatpush2.bf16.msra.mxu0 0
      %252 = vmatprep.subr.bf16.mxu0 0
      %253 = vmatpush2.bf16.msra.mxu0 0
      %254 = vmatprep.mubr.bf16.mxu0 0
      %255 = vmatmul.mubr.bf16.gmra.mxu0 %v210
      %v256 = vpop.f32.mrf.mxu0
      %v257 = vadd.f32 0.0, %v256
      %v258 = vpop.f32.mrf.mxu0
      %v259 = vadd.f32 0.0, %v258
      %v260 = vpop.f32.mrf.mxu0
      %v261 = vpop.f32.mrf.mxu0
      %262 = vdwg.mxu0
      %263 = vmatprep.subr.bf16.mxu0 0
      %264 = vmatpush1.bf16.msra.mxu0 0
      %265 = vmatprep.subr.bf16.mxu0 0
      %266 = vmatpush1.bf16.msra.mxu0 0
      %267 = vmatprep.subr.bf16.mxu0 0
      %268 = vmatpush1.bf16.msra.mxu0 0
      %269 = vmatprep.subr.bf16.mxu0 0
      %270 = vmatpush1.bf16.msra.mxu0 0
      %271 = vmatprep.subr.bf16.mxu0 0
      %272 = vmatpush1.bf16.msra.mxu0 0
      %273 = vmatprep.subr.bf16.mxu0 0
      %274 = vmatpush1.bf16.msra.mxu0 0
      %275 = vmatprep.subr.bf16.mxu0 0
      %276 = vmatpush1.bf16.msra.mxu0 0
      %277 = vmatprep.subr.bf16.mxu0 0
      %278 = vmatpush1.bf16.msra.mxu0 %v220
      %279 = vmatprep.subr.bf16.mxu0 0
      %280 = vmatpush2.bf16.msra.mxu0 0
      %281 = vmatprep.subr.bf16.mxu0 0
      %282 = vmatpush2.bf16.msra.mxu0 0
      %283 = vmatprep.subr.bf16.mxu0 0
      %284 = vmatpush2.bf16.msra.mxu0 0
      %285 = vmatprep.subr.bf16.mxu0 0
      %286 = vmatpush2.bf16.msra.mxu0 0
      %287 = vmatprep.subr.bf16.mxu0 0
      %288 = vmatpush2.bf16.msra.mxu0 0
      %289 = vmatprep.subr.bf16.mxu0 0
      %290 = vmatpush2.bf16.msra.mxu0 0
      %291 = vmatprep.subr.bf16.mxu0 0
      %292 = vmatpush2.bf16.msra.mxu0 0
      %293 = vmatprep.subr.bf16.mxu0 0
      %294 = vmatpush2.bf16.msra.mxu0 0
      %295 = vmatprep.mubr.bf16.mxu0 0
      %296 = vmatmul.mubr.bf16.gmra.mxu0 %v210
      %v297 = vpop.f32.mrf.mxu0
      %v298 = vadd.f32 0.0, %v297
      %v299 = vpop.f32.mrf.mxu0
      %v300 = vpop.f32.mrf.mxu0
      %v301 = vpop.f32.mrf.mxu0
      %302 = vdwg.mxu0
      %v304 = vsel %vm208, %v174, 0
      %v307 = vsel %vm212, %v196, 0
      %v310 = vsel %vm212, %v197, 0
      %v313 = vsel %vm212, %v198, 0
      %315 = vmatprep.subr.bf16.mxu0 0
      %316 = vmatpush1.bf16.msra.mxu0 0
      %317 = vmatprep.subr.bf16.mxu0 0
      %318 = vmatpush1.bf16.msra.mxu0 0
      %319 = vmatprep.subr.bf16.mxu0 0
      %320 = vmatpush1.bf16.msra.mxu0 0
      %321 = vmatprep.subr.bf16.mxu0 0
      %322 = vmatpush1.bf16.msra.mxu0 0
      %323 = vmatprep.subr.bf16.mxu0 0
      %324 = vmatpush1.bf16.msra.mxu0 0
      %325 = vmatprep.subr.bf16.mxu0 0
      %326 = vmatpush1.bf16.msra.mxu0 0
      %327 = vmatprep.subr.bf16.mxu0 0
      %328 = vmatpush1.bf16.msra.mxu0 0
      %329 = vmatprep.subr.bf16.mxu0 %v310
      %330 = vmatpush1.bf16.msra.mxu0 %v307
      %331 = vmatprep.subr.bf16.mxu0 0
      %332 = vmatpush2.bf16.msra.mxu0 0
      %333 = vmatprep.subr.bf16.mxu0 0
      %334 = vmatpush2.bf16.msra.mxu0 0
      %335 = vmatprep.subr.bf16.mxu0 0
      %336 = vmatpush2.bf16.msra.mxu0 0
      %337 = vmatprep.subr.bf16.mxu0 0
      %338 = vmatpush2.bf16.msra.mxu0 0
      %339 = vmatprep.subr.bf16.mxu0 0
      %340 = vmatpush2.bf16.msra.mxu0 0
      %341 = vmatprep.subr.bf16.mxu0 0
      %342 = vmatpush2.bf16.msra.mxu0 0
      %343 = vmatprep.subr.bf16.mxu0 0
      %344 = vmatpush2.bf16.msra.mxu0 0
      %345 = vmatprep.subr.bf16.mxu0 0
      %346 = vmatpush2.bf16.msra.mxu0 0
      %347 = vmatprep.mubr.bf16.mxu0 0
      %348 = vmatmul.mubr.bf16.gmra.mxu0 %v304
      %v349 = vpop.f32.mrf.mxu0
      %v350 = vadd.f32 %v257, %v349
      %v351 = vpop.f32.mrf.mxu0
      %v352 = vadd.f32 %v259, %v351
      %v353 = vpop.f32.mrf.mxu0
      %v354 = vpop.f32.mrf.mxu0
      %355 = vdwg.mxu0
      %356 = vmatprep.subr.bf16.mxu0 0
      %357 = vmatpush1.bf16.msra.mxu0 0
      %358 = vmatprep.subr.bf16.mxu0 0
      %359 = vmatpush1.bf16.msra.mxu0 0
      %360 = vmatprep.subr.bf16.mxu0 0
      %361 = vmatpush1.bf16.msra.mxu0 0
      %362 = vmatprep.subr.bf16.mxu0 0
      %363 = vmatpush1.bf16.msra.mxu0 0
      %364 = vmatprep.subr.bf16.mxu0 0
      %365 = vmatpush1.bf16.msra.mxu0 0
      %366 = vmatprep.subr.bf16.mxu0 0
      %367 = vmatpush1.bf16.msra.mxu0 0
      %368 = vmatprep.subr.bf16.mxu0 0
      %369 = vmatpush1.bf16.msra.mxu0 0
      %370 = vmatprep.subr.bf16.mxu0 0
      %371 = vmatpush1.bf16.msra.mxu0 %v313
      %372 = vmatprep.subr.bf16.mxu0 0
      %373 = vmatpush2.bf16.msra.mxu0 0
      %374 = vmatprep.subr.bf16.mxu0 0
      %375 = vmatpush2.bf16.msra.mxu0 0
      %376 = vmatprep.subr.bf16.mxu0 0
      %377 = vmatpush2.bf16.msra.mxu0 0
      %378 = vmatprep.subr.bf16.mxu0 0
      %379 = vmatpush2.bf16.msra.mxu0 0
      %380 = vmatprep.subr.bf16.mxu0 0
      %381 = vmatpush2.bf16.msra.mxu0 0
      %382 = vmatprep.subr.bf16.mxu0 0
      %383 = vmatpush2.bf16.msra.mxu0 0
      %384 = vmatprep.subr.bf16.mxu0 0
      %385 = vmatpush2.bf16.msra.mxu0 0
      %386 = vmatprep.subr.bf16.mxu0 0
      %387 = vmatpush2.bf16.msra.mxu0 0
      %388 = vmatprep.mubr.bf16.mxu0 0
      %389 = vmatmul.mubr.bf16.gmra.mxu0 %v304
      %v390 = vpop.f32.mrf.mxu0
      %v391 = vadd.f32 %v298, %v390
      %v392 = vpop.f32.mrf.mxu0
      %v393 = vpop.f32.mrf.mxu0
      %v394 = vpop.f32.mrf.mxu0
      %395 = vdwg.mxu0
      %396 = vrot.lane.b32.xlu0 %v196, 110
      %v397 = vpop.permute.xlu0 %396
      %398 = vrot.lane.b32.xlu0 %v197, 110
      %v399 = vpop.permute.xlu0 %398
      %400 = vrot.lane.b32.xlu0 %v198, 110
      %v401 = vpop.permute.xlu0 %400
      %vm402 = vcmask 900096
      %v403 = vsel %vm402, %v397, %v399
      %v404 = vsel %vm402, %v399, %v401
      %v406 = vsel %vm208, %v176, 0
      %v409 = vsel %vm212, %v403, 0
      %v412 = vsel %vm212, %v404, 0
      %v415 = vsel %vm212, %v401, 0
      %417 = vmatprep.subr.bf16.mxu0 0
      %418 = vmatpush1.bf16.msra.mxu0 0
      %419 = vmatprep.subr.bf16.mxu0 0
      %420 = vmatpush1.bf16.msra.mxu0 0
      %421 = vmatprep.subr.bf16.mxu0 0
      %422 = vmatpush1.bf16.msra.mxu0 0
      %423 = vmatprep.subr.bf16.mxu0 0
      %424 = vmatpush1.bf16.msra.mxu0 0
      %425 = vmatprep.subr.bf16.mxu0 0
      %426 = vmatpush1.bf16.msra.mxu0 0
      %427 = vmatprep.subr.bf16.mxu0 0
      %428 = vmatpush1.bf16.msra.mxu0 0
      %429 = vmatprep.subr.bf16.mxu0 0
      %430 = vmatpush1.bf16.msra.mxu0 0
      %431 = vmatprep.subr.bf16.mxu0 %v412
      %432 = vmatpush1.bf16.msra.mxu0 %v409
      %433 = vmatprep.subr.bf16.mxu0 0
      %434 = vmatpush2.bf16.msra.mxu0 0
      %435 = vmatprep.subr.bf16.mxu0 0
      %436 = vmatpush2.bf16.msra.mxu0 0
      %437 = vmatprep.subr.bf16.mxu0 0
      %438 = vmatpush2.bf16.msra.mxu0 0
      %439 = vmatprep.subr.bf16.mxu0 0
      %440 = vmatpush2.bf16.msra.mxu0 0
      %441 = vmatprep.subr.bf16.mxu0 0
      %442 = vmatpush2.bf16.msra.mxu0 0
      %443 = vmatprep.subr.bf16.mxu0 0
      %444 = vmatpush2.bf16.msra.mxu0 0
      %445 = vmatprep.subr.bf16.mxu0 0
      %446 = vmatpush2.bf16.msra.mxu0 0
      %447 = vmatprep.subr.bf16.mxu0 0
      %448 = vmatpush2.bf16.msra.mxu0 0
      %449 = vmatprep.mubr.bf16.mxu0 0
      %450 = vmatmul.mubr.bf16.gmra.mxu0 %v406
      %v451 = vpop.f32.mrf.mxu0
      %v452 = vadd.f32 0.0, %v451
      %v453 = vpop.f32.mrf.mxu0
      %v454 = vadd.f32 0.0, %v453
      %v455 = vpop.f32.mrf.mxu0
      %v456 = vpop.f32.mrf.mxu0
      %457 = vdwg.mxu0
      %458 = vmatprep.subr.bf16.mxu0 0
      %459 = vmatpush1.bf16.msra.mxu0 0
      %460 = vmatprep.subr.bf16.mxu0 0
      %461 = vmatpush1.bf16.msra.mxu0 0
      %462 = vmatprep.subr.bf16.mxu0 0
      %463 = vmatpush1.bf16.msra.mxu0 0
      %464 = vmatprep.subr.bf16.mxu0 0
      %465 = vmatpush1.bf16.msra.mxu0 0
      %466 = vmatprep.subr.bf16.mxu0 0
      %467 = vmatpush1.bf16.msra.mxu0 0
      %468 = vmatprep.subr.bf16.mxu0 0
      %469 = vmatpush1.bf16.msra.mxu0 0
      %470 = vmatprep.subr.bf16.mxu0 0
      %471 = vmatpush1.bf16.msra.mxu0 0
      %472 = vmatprep.subr.bf16.mxu0 0
      %473 = vmatpush1.bf16.msra.mxu0 %v415
      %474 = vmatprep.subr.bf16.mxu0 0
      %475 = vmatpush2.bf16.msra.mxu0 0
      %476 = vmatprep.subr.bf16.mxu0 0
      %477 = vmatpush2.bf16.msra.mxu0 0
      %478 = vmatprep.subr.bf16.mxu0 0
      %479 = vmatpush2.bf16.msra.mxu0 0
      %480 = vmatprep.subr.bf16.mxu0 0
      %481 = vmatpush2.bf16.msra.mxu0 0
      %482 = vmatprep.subr.bf16.mxu0 0
      %483 = vmatpush2.bf16.msra.mxu0 0
      %484 = vmatprep.subr.bf16.mxu0 0
      %485 = vmatpush2.bf16.msra.mxu0 0
      %486 = vmatprep.subr.bf16.mxu0 0
      %487 = vmatpush2.bf16.msra.mxu0 0
      %488 = vmatprep.subr.bf16.mxu0 0
      %489 = vmatpush2.bf16.msra.mxu0 0
      %490 = vmatprep.mubr.bf16.mxu0 0
      %491 = vmatmul.mubr.bf16.gmra.mxu0 %v406
      %v492 = vpop.f32.mrf.mxu0
      %v493 = vadd.f32 0.0, %v492
      %v494 = vpop.f32.mrf.mxu0
      %v495 = vpop.f32.mrf.mxu0
      %v496 = vpop.f32.mrf.mxu0
      %497 = vdwg.mxu0
      %v498 = vadd.f32 %v350, %v452
      %v499 = vadd.f32 %v352, %v454
      %v500 = vadd.f32 %v391, %v493
      %501 = vrot.lane.b32.xlu0 %v196, 109
      %v502 = vpop.permute.xlu0 %501
      %503 = vrot.lane.b32.xlu0 %v197, 109
      %v504 = vpop.permute.xlu0 %503
      %505 = vrot.lane.b32.xlu0 %v198, 109
      %v506 = vpop.permute.xlu0 %505
      %vm507 = vcmask 891904
      %v508 = vsel %vm507, %v502, %v504
      %v509 = vsel %vm507, %v504, %v506
      %v511 = vsel %vm208, %v177, 0
      %v514 = vsel %vm212, %v508, 0
      %v517 = vsel %vm212, %v509, 0
      %v520 = vsel %vm212, %v506, 0
      %522 = vmatprep.subr.bf16.mxu0 0
      %523 = vmatpush1.bf16.msra.mxu0 0
      %524 = vmatprep.subr.bf16.mxu0 0
      %525 = vmatpush1.bf16.msra.mxu0 0
      %526 = vmatprep.subr.bf16.mxu0 0
      %527 = vmatpush1.bf16.msra.mxu0 0
      %528 = vmatprep.subr.bf16.mxu0 0
      %529 = vmatpush1.bf16.msra.mxu0 0
      %530 = vmatprep.subr.bf16.mxu0 0
      %531 = vmatpush1.bf16.msra.mxu0 0
      %532 = vmatprep.subr.bf16.mxu0 0
      %533 = vmatpush1.bf16.msra.mxu0 0
      %534 = vmatprep.subr.bf16.mxu0 0
      %535 = vmatpush1.bf16.msra.mxu0 0
      %536 = vmatprep.subr.bf16.mxu0 %v517
      %537 = vmatpush1.bf16.msra.mxu0 %v514
      %538 = vmatprep.subr.bf16.mxu0 0
      %539 = vmatpush2.bf16.msra.mxu0 0
      %540 = vmatprep.subr.bf16.mxu0 0
      %541 = vmatpush2.bf16.msra.mxu0 0
      %542 = vmatprep.subr.bf16.mxu0 0
      %543 = vmatpush2.bf16.msra.mxu0 0
      %544 = vmatprep.subr.bf16.mxu0 0
      %545 = vmatpush2.bf16.msra.mxu0 0
      %546 = vmatprep.subr.bf16.mxu0 0
      %547 = vmatpush2.bf16.msra.mxu0 0
      %548 = vmatprep.subr.bf16.mxu0 0
      %549 = vmatpush2.bf16.msra.mxu0 0
      %550 = vmatprep.subr.bf16.mxu0 0
      %551 = vmatpush2.bf16.msra.mxu0 0
      %552 = vmatprep.subr.bf16.mxu0 0
      %553 = vmatpush2.bf16.msra.mxu0 0
      %554 = vmatprep.mubr.bf16.mxu0 0
      %555 = vmatmul.mubr.bf16.gmra.mxu0 %v511
      %v556 = vpop.f32.mrf.mxu0
      %v557 = vadd.f32 0.0, %v556
      %v558 = vpop.f32.mrf.mxu0
      %v559 = vadd.f32 0.0, %v558
      %v560 = vpop.f32.mrf.mxu0
      %v561 = vpop.f32.mrf.mxu0
      %562 = vdwg.mxu0
      %563 = vmatprep.subr.bf16.mxu0 0
      %564 = vmatpush1.bf16.msra.mxu0 0
      %565 = vmatprep.subr.bf16.mxu0 0
      %566 = vmatpush1.bf16.msra.mxu0 0
      %567 = vmatprep.subr.bf16.mxu0 0
      %568 = vmatpush1.bf16.msra.mxu0 0
      %569 = vmatprep.subr.bf16.mxu0 0
      %570 = vmatpush1.bf16.msra.mxu0 0
      %571 = vmatprep.subr.bf16.mxu0 0
      %572 = vmatpush1.bf16.msra.mxu0 0
      %573 = vmatprep.subr.bf16.mxu0 0
      %574 = vmatpush1.bf16.msra.mxu0 0
      %575 = vmatprep.subr.bf16.mxu0 0
      %576 = vmatpush1.bf16.msra.mxu0 0
      %577 = vmatprep.subr.bf16.mxu0 0
      %578 = vmatpush1.bf16.msra.mxu0 %v520
      %579 = vmatprep.subr.bf16.mxu0 0
      %580 = vmatpush2.bf16.msra.mxu0 0
      %581 = vmatprep.subr.bf16.mxu0 0
      %582 = vmatpush2.bf16.msra.mxu0 0
      %583 = vmatprep.subr.bf16.mxu0 0
      %584 = vmatpush2.bf16.msra.mxu0 0
      %585 = vmatprep.subr.bf16.mxu0 0
      %586 = vmatpush2.bf16.msra.mxu0 0
      %587 = vmatprep.subr.bf16.mxu0 0
      %588 = vmatpush2.bf16.msra.mxu0 0
      %589 = vmatprep.subr.bf16.mxu0 0
      %590 = vmatpush2.bf16.msra.mxu0 0
      %591 = vmatprep.subr.bf16.mxu0 0
      %592 = vmatpush2.bf16.msra.mxu0 0
      %593 = vmatprep.subr.bf16.mxu0 0
      %594 = vmatpush2.bf16.msra.mxu0 0
      %595 = vmatprep.mubr.bf16.mxu0 0
      %596 = vmatmul.mubr.bf16.gmra.mxu0 %v511
      %v597 = vpop.f32.mrf.mxu0
      %v598 = vadd.f32 0.0, %v597
      %v599 = vpop.f32.mrf.mxu0
      %v600 = vpop.f32.mrf.mxu0
      %v601 = vpop.f32.mrf.mxu0
      %602 = vdwg.mxu0
      %v603 = vadd.f32 %v498, %v557
      %v604 = vadd.f32 %v499, %v559
      %v605 = vadd.f32 %v500, %v598
      %607 = vset.pattern.permute.xlu0 0
      %608 = vperm.xlu0 %607, %v190
      %v609 = vpop.permute.xlu0 %608
      %v611 = vadd.f32 %v603, %v609
      %v612 = vadd.f32 %v604, %v609
      %v613 = vadd.f32 %v605, %v609
      %v614 = vpack.c.bf16 %v611, %v611
      %v615 = vpack.c.bf16 %v612, %v612
      %v616 = vpack.c.bf16 %v613, %v613
      %v620 = vcombine.low %v614, %v615
      %v622 = vunpack.c.l.s4 1983009808
      %v623 = vunpack.c.0.s8 %v622
      %v624 = vlaneseq
      %v625 = vshrl.u32 %v624, 7
      %v626 = vsub.s32 %v623, %v625
      %v627 = vrot.slane %v620, %v626
      %v629 = vunpack.c.l.s4 1983009808
      %v630 = vunpack.c.0.s8 %v629
      %v631 = vlaneseq
      %v632 = vshrl.u32 %v631, 7
      %v633 = vsub.s32 %v630, %v632
      %v634 = vrot.slane %v616, %v633
      %v635 = vcombine.low %v627, %v634
      %vm637 = vcmask 1041408
      %vm638 = vcmask 1043458
      %vm639 = vmor %vm638, %vm637
      %vm640 = vcmask 259076
      %vm641 = vmor %vm640, %vm639
      %642 = vst.msk [vmem:[%s170] sm:$0x3f] %vm641, %v635
      %643 = vrot.lane.b32.xlu0 %v196, 126
      %v644 = vpop.permute.xlu0 %643
      %645 = vrot.lane.b32.xlu0 %v197, 126
      %v646 = vpop.permute.xlu0 %645
      %647 = vrot.lane.b32.xlu0 %v198, 126
      %v648 = vpop.permute.xlu0 %647
      %vm649 = vcmask 1031168
      %v650 = vsel %vm649, %v644, %v646
      %v651 = vsel %vm649, %v646, %v648
      %v653 = vsel %vm208, %v179, 0
      %v656 = vsel %vm212, %v650, 0
      %v659 = vsel %vm212, %v651, 0
      %v662 = vsel %vm212, %v648, 0
      %664 = vmatprep.subr.bf16.mxu0 0
      %665 = vmatpush1.bf16.msra.mxu0 0
      %666 = vmatprep.subr.bf16.mxu0 0
      %667 = vmatpush1.bf16.msra.mxu0 0
      %668 = vmatprep.subr.bf16.mxu0 0
      %669 = vmatpush1.bf16.msra.mxu0 0
      %670 = vmatprep.subr.bf16.mxu0 0
      %671 = vmatpush1.bf16.msra.mxu0 0
      %672 = vmatprep.subr.bf16.mxu0 0
      %673 = vmatpush1.bf16.msra.mxu0 0
      %674 = vmatprep.subr.bf16.mxu0 0
      %675 = vmatpush1.bf16.msra.mxu0 0
      %676 = vmatprep.subr.bf16.mxu0 0
      %677 = vmatpush1.bf16.msra.mxu0 0
      %678 = vmatprep.subr.bf16.mxu0 %v659
      %679 = vmatpush1.bf16.msra.mxu0 %v656
      %680 = vmatprep.subr.bf16.mxu0 0
      %681 = vmatpush2.bf16.msra.mxu0 0
      %682 = vmatprep.subr.bf16.mxu0 0
      %683 = vmatpush2.bf16.msra.mxu0 0
      %684 = vmatprep.subr.bf16.mxu0 0
      %685 = vmatpush2.bf16.msra.mxu0 0
      %686 = vmatprep.subr.bf16.mxu0 0
      %687 = vmatpush2.bf16.msra.mxu0 0
      %688 = vmatprep.subr.bf16.mxu0 0
      %689 = vmatpush2.bf16.msra.mxu0 0
      %690 = vmatprep.subr.bf16.mxu0 0
      %691 = vmatpush2.bf16.msra.mxu0 0
      %692 = vmatprep.subr.bf16.mxu0 0
      %693 = vmatpush2.bf16.msra.mxu0 0
      %694 = vmatprep.subr.bf16.mxu0 0
      %695 = vmatpush2.bf16.msra.mxu0 0
      %696 = vmatprep.mubr.bf16.mxu0 0
      %697 = vmatmul.mubr.bf16.gmra.mxu0 %v653
      %v698 = vpop.f32.mrf.mxu0
      %v699 = vadd.f32 0.0, %v698
      %v700 = vpop.f32.mrf.mxu0
      %v701 = vadd.f32 0.0, %v700
      %v702 = vpop.f32.mrf.mxu0
      %v703 = vpop.f32.mrf.mxu0
      %704 = vdwg.mxu0
      %705 = vmatprep.subr.bf16.mxu0 0
      %706 = vmatpush1.bf16.msra.mxu0 0
      %707 = vmatprep.subr.bf16.mxu0 0
      %708 = vmatpush1.bf16.msra.mxu0 0
      %709 = vmatprep.subr.bf16.mxu0 0
      %710 = vmatpush1.bf16.msra.mxu0 0
      %711 = vmatprep.subr.bf16.mxu0 0
      %712 = vmatpush1.bf16.msra.mxu0 0
      %713 = vmatprep.subr.bf16.mxu0 0
      %714 = vmatpush1.bf16.msra.mxu0 0
      %715 = vmatprep.subr.bf16.mxu0 0
      %716 = vmatpush1.bf16.msra.mxu0 0
      %717 = vmatprep.subr.bf16.mxu0 0
      %718 = vmatpush1.bf16.msra.mxu0 0
      %719 = vmatprep.subr.bf16.mxu0 0
      %720 = vmatpush1.bf16.msra.mxu0 %v662
      %721 = vmatprep.subr.bf16.mxu0 0
      %722 = vmatpush2.bf16.msra.mxu0 0
      %723 = vmatprep.subr.bf16.mxu0 0
      %724 = vmatpush2.bf16.msra.mxu0 0
      %725 = vmatprep.subr.bf16.mxu0 0
      %726 = vmatpush2.bf16.msra.mxu0 0
      %727 = vmatprep.subr.bf16.mxu0 0
      %728 = vmatpush2.bf16.msra.mxu0 0
      %729 = vmatprep.subr.bf16.mxu0 0
      %730 = vmatpush2.bf16.msra.mxu0 0
      %731 = vmatprep.subr.bf16.mxu0 0
      %732 = vmatpush2.bf16.msra.mxu0 0
      %733 = vmatprep.subr.bf16.mxu0 0
      %734 = vmatpush2.bf16.msra.mxu0 0
      %735 = vmatprep.subr.bf16.mxu0 0
      %736 = vmatpush2.bf16.msra.mxu0 0
      %737 = vmatprep.mubr.bf16.mxu0 0
      %738 = vmatmul.mubr.bf16.gmra.mxu0 %v653
      %v739 = vpop.f32.mrf.mxu0
      %v740 = vadd.f32 0.0, %v739
      %v741 = vpop.f32.mrf.mxu0
      %v742 = vpop.f32.mrf.mxu0
      %v743 = vpop.f32.mrf.mxu0
      %744 = vdwg.mxu0
      %v746 = vsel %vm208, %v178, 0
      %748 = vmatprep.subr.bf16.mxu0 0
      %749 = vmatpush1.bf16.msra.mxu0 0
      %750 = vmatprep.subr.bf16.mxu0 0
      %751 = vmatpush1.bf16.msra.mxu0 0
      %752 = vmatprep.subr.bf16.mxu0 0
      %753 = vmatpush1.bf16.msra.mxu0 0
      %754 = vmatprep.subr.bf16.mxu0 0
      %755 = vmatpush1.bf16.msra.mxu0 0
      %756 = vmatprep.subr.bf16.mxu0 0
      %757 = vmatpush1.bf16.msra.mxu0 0
      %758 = vmatprep.subr.bf16.mxu0 0
      %759 = vmatpush1.bf16.msra.mxu0 0
      %760 = vmatprep.subr.bf16.mxu0 0
      %761 = vmatpush1.bf16.msra.mxu0 0
      %762 = vmatprep.subr.bf16.mxu0 %v217
      %763 = vmatpush1.bf16.msra.mxu0 %v214
      %764 = vmatprep.subr.bf16.mxu0 0
      %765 = vmatpush2.bf16.msra.mxu0 0
      %766 = vmatprep.subr.bf16.mxu0 0
      %767 = vmatpush2.bf16.msra.mxu0 0
      %768 = vmatprep.subr.bf16.mxu0 0
      %769 = vmatpush2.bf16.msra.mxu0 0
      %770 = vmatprep.subr.bf16.mxu0 0
      %771 = vmatpush2.bf16.msra.mxu0 0
      %772 = vmatprep.subr.bf16.mxu0 0
      %773 = vmatpush2.bf16.msra.mxu0 0
      %774 = vmatprep.subr.bf16.mxu0 0
      %775 = vmatpush2.bf16.msra.mxu0 0
      %776 = vmatprep.subr.bf16.mxu0 0
      %777 = vmatpush2.bf16.msra.mxu0 0
      %778 = vmatprep.subr.bf16.mxu0 0
      %779 = vmatpush2.bf16.msra.mxu0 0
      %780 = vmatprep.mubr.bf16.mxu0 0
      %781 = vmatmul.mubr.bf16.gmra.mxu0 %v746
      %v782 = vpop.f32.mrf.mxu0
      %v783 = vadd.f32 %v699, %v782
      %v784 = vpop.f32.mrf.mxu0
      %v785 = vadd.f32 %v701, %v784
      %v786 = vpop.f32.mrf.mxu0
      %v787 = vpop.f32.mrf.mxu0
      %788 = vdwg.mxu0
      %789 = vmatprep.subr.bf16.mxu0 0
      %790 = vmatpush1.bf16.msra.mxu0 0
      %791 = vmatprep.subr.bf16.mxu0 0
      %792 = vmatpush1.bf16.msra.mxu0 0
      %793 = vmatprep.subr.bf16.mxu0 0
      %794 = vmatpush1.bf16.msra.mxu0 0
      %795 = vmatprep.subr.bf16.mxu0 0
      %796 = vmatpush1.bf16.msra.mxu0 0
      %797 = vmatprep.subr.bf16.mxu0 0
      %798 = vmatpush1.bf16.msra.mxu0 0
      %799 = vmatprep.subr.bf16.mxu0 0
      %800 = vmatpush1.bf16.msra.mxu0 0
      %801 = vmatprep.subr.bf16.mxu0 0
      %802 = vmatpush1.bf16.msra.mxu0 0
      %803 = vmatprep.subr.bf16.mxu0 0
      %804 = vmatpush1.bf16.msra.mxu0 %v220
      %805 = vmatprep.subr.bf16.mxu0 0
      %806 = vmatpush2.bf16.msra.mxu0 0
      %807 = vmatprep.subr.bf16.mxu0 0
      %808 = vmatpush2.bf16.msra.mxu0 0
      %809 = vmatprep.subr.bf16.mxu0 0
      %810 = vmatpush2.bf16.msra.mxu0 0
      %811 = vmatprep.subr.bf16.mxu0 0
      %812 = vmatpush2.bf16.msra.mxu0 0
      %813 = vmatprep.subr.bf16.mxu0 0
      %814 = vmatpush2.bf16.msra.mxu0 0
      %815 = vmatprep.subr.bf16.mxu0 0
      %816 = vmatpush2.bf16.msra.mxu0 0
      %817 = vmatprep.subr.bf16.mxu0 0
      %818 = vmatpush2.bf16.msra.mxu0 0
      %819 = vmatprep.subr.bf16.mxu0 0
      %820 = vmatpush2.bf16.msra.mxu0 0
      %821 = vmatprep.mubr.bf16.mxu0 0
      %822 = vmatmul.mubr.bf16.gmra.mxu0 %v746
      %v823 = vpop.f32.mrf.mxu0
      %v824 = vadd.f32 %v740, %v823
      %v825 = vpop.f32.mrf.mxu0
      %v826 = vpop.f32.mrf.mxu0
      %v827 = vpop.f32.mrf.mxu0
      %828 = vdwg.mxu0
      %v830 = vsel %vm208, %v180, 0
      %832 = vmatprep.subr.bf16.mxu0 0
      %833 = vmatpush1.bf16.msra.mxu0 0
      %834 = vmatprep.subr.bf16.mxu0 0
      %835 = vmatpush1.bf16.msra.mxu0 0
      %836 = vmatprep.subr.bf16.mxu0 0
      %837 = vmatpush1.bf16.msra.mxu0 0
      %838 = vmatprep.subr.bf16.mxu0 0
      %839 = vmatpush1.bf16.msra.mxu0 0
      %840 = vmatprep.subr.bf16.mxu0 0
      %841 = vmatpush1.bf16.msra.mxu0 0
      %842 = vmatprep.subr.bf16.mxu0 0
      %843 = vmatpush1.bf16.msra.mxu0 0
      %844 = vmatprep.subr.bf16.mxu0 0
      %845 = vmatpush1.bf16.msra.mxu0 0
      %846 = vmatprep.subr.bf16.mxu0 %v517
      %847 = vmatpush1.bf16.msra.mxu0 %v514
      %848 = vmatprep.subr.bf16.mxu0 0
      %849 = vmatpush2.bf16.msra.mxu0 0
      %850 = vmatprep.subr.bf16.mxu0 0
      %851 = vmatpush2.bf16.msra.mxu0 0
      %852 = vmatprep.subr.bf16.mxu0 0
      %853 = vmatpush2.bf16.msra.mxu0 0
      %854 = vmatprep.subr.bf16.mxu0 0
      %855 = vmatpush2.bf16.msra.mxu0 0
      %856 = vmatprep.subr.bf16.mxu0 0
      %857 = vmatpush2.bf16.msra.mxu0 0
      %858 = vmatprep.subr.bf16.mxu0 0
      %859 = vmatpush2.bf16.msra.mxu0 0
      %860 = vmatprep.subr.bf16.mxu0 0
      %861 = vmatpush2.bf16.msra.mxu0 0
      %862 = vmatprep.subr.bf16.mxu0 0
      %863 = vmatpush2.bf16.msra.mxu0 0
      %864 = vmatprep.mubr.bf16.mxu0 0
      %865 = vmatmul.mubr.bf16.gmra.mxu0 %v830
      %v866 = vpop.f32.mrf.mxu0
      %v867 = vadd.f32 0.0, %v866
      %v868 = vpop.f32.mrf.mxu0
      %v869 = vadd.f32 0.0, %v868
      %v870 = vpop.f32.mrf.mxu0
      %v871 = vpop.f32.mrf.mxu0
      %872 = vdwg.mxu0
      %873 = vmatprep.subr.bf16.mxu0 0
      %874 = vmatpush1.bf16.msra.mxu0 0
      %875 = vmatprep.subr.bf16.mxu0 0
      %876 = vmatpush1.bf16.msra.mxu0 0
      %877 = vmatprep.subr.bf16.mxu0 0
      %878 = vmatpush1.bf16.msra.mxu0 0
      %879 = vmatprep.subr.bf16.mxu0 0
      %880 = vmatpush1.bf16.msra.mxu0 0
      %881 = vmatprep.subr.bf16.mxu0 0
      %882 = vmatpush1.bf16.msra.mxu0 0
      %883 = vmatprep.subr.bf16.mxu0 0
      %884 = vmatpush1.bf16.msra.mxu0 0
      %885 = vmatprep.subr.bf16.mxu0 0
      %886 = vmatpush1.bf16.msra.mxu0 0
      %887 = vmatprep.subr.bf16.mxu0 0
      %888 = vmatpush1.bf16.msra.mxu0 %v520
      %889 = vmatprep.subr.bf16.mxu0 0
      %890 = vmatpush2.bf16.msra.mxu0 0
      %891 = vmatprep.subr.bf16.mxu0 0
      %892 = vmatpush2.bf16.msra.mxu0 0
      %893 = vmatprep.subr.bf16.mxu0 0
      %894 = vmatpush2.bf16.msra.mxu0 0
      %895 = vmatprep.subr.bf16.mxu0 0
      %896 = vmatpush2.bf16.msra.mxu0 0
      %897 = vmatprep.subr.bf16.mxu0 0
      %898 = vmatpush2.bf16.msra.mxu0 0
      %899 = vmatprep.subr.bf16.mxu0 0
      %900 = vmatpush2.bf16.msra.mxu0 0
      %901 = vmatprep.subr.bf16.mxu0 0
      %902 = vmatpush2.bf16.msra.mxu0 0
      %903 = vmatprep.subr.bf16.mxu0 0
      %904 = vmatpush2.bf16.msra.mxu0 0
      %905 = vmatprep.mubr.bf16.mxu0 0
      %906 = vmatmul.mubr.bf16.gmra.mxu0 %v830
      %v907 = vpop.f32.mrf.mxu0
      %v908 = vadd.f32 0.0, %v907
      %v909 = vpop.f32.mrf.mxu0
      %v910 = vpop.f32.mrf.mxu0
      %v911 = vpop.f32.mrf.mxu0
      %912 = vdwg.mxu0
      %v913 = vadd.f32 %v783, %v867
      %v914 = vadd.f32 %v785, %v869
      %v915 = vadd.f32 %v824, %v908
      %916 = vrot.lane.b32.xlu0 %v196, 108
      %v917 = vpop.permute.xlu0 %916
      %918 = vrot.lane.b32.xlu0 %v197, 108
      %v919 = vpop.permute.xlu0 %918
      %920 = vrot.lane.b32.xlu0 %v198, 108
      %v921 = vpop.permute.xlu0 %920
      %vm922 = vcmask 883712
      %v923 = vsel %vm922, %v917, %v919
      %v924 = vsel %vm922, %v919, %v921
      %v926 = vsel %vm208, %v181, 0
      %v929 = vsel %vm212, %v923, 0
      %v932 = vsel %vm212, %v924, 0
      %v935 = vsel %vm212, %v921, 0
      %937 = vmatprep.subr.bf16.mxu0 0
      %938 = vmatpush1.bf16.msra.mxu0 0
      %939 = vmatprep.subr.bf16.mxu0 0
      %940 = vmatpush1.bf16.msra.mxu0 0
      %941 = vmatprep.subr.bf16.mxu0 0
      %942 = vmatpush1.bf16.msra.mxu0 0
      %943 = vmatprep.subr.bf16.mxu0 0
      %944 = vmatpush1.bf16.msra.mxu0 0
      %945 = vmatprep.subr.bf16.mxu0 0
      %946 = vmatpush1.bf16.msra.mxu0 0
      %947 = vmatprep.subr.bf16.mxu0 0
      %948 = vmatpush1.bf16.msra.mxu0 0
      %949 = vmatprep.subr.bf16.mxu0 0
      %950 = vmatpush1.bf16.msra.mxu0 0
      %951 = vmatprep.subr.bf16.mxu0 %v932
      %952 = vmatpush1.bf16.msra.mxu0 %v929
      %953 = vmatprep.subr.bf16.mxu0 0
      %954 = vmatpush2.bf16.msra.mxu0 0
      %955 = vmatprep.subr.bf16.mxu0 0
      %956 = vmatpush2.bf16.msra.mxu0 0
      %957 = vmatprep.subr.bf16.mxu0 0
      %958 = vmatpush2.bf16.msra.mxu0 0
      %959 = vmatprep.subr.bf16.mxu0 0
      %960 = vmatpush2.bf16.msra.mxu0 0
      %961 = vmatprep.subr.bf16.mxu0 0
      %962 = vmatpush2.bf16.msra.mxu0 0
      %963 = vmatprep.subr.bf16.mxu0 0
      %964 = vmatpush2.bf16.msra.mxu0 0
      %965 = vmatprep.subr.bf16.mxu0 0
      %966 = vmatpush2.bf16.msra.mxu0 0
      %967 = vmatprep.subr.bf16.mxu0 0
      %968 = vmatpush2.bf16.msra.mxu0 0
      %969 = vmatprep.mubr.bf16.mxu0 0
      %970 = vmatmul.mubr.bf16.gmra.mxu0 %v926
      %v971 = vpop.f32.mrf.mxu0
      %v972 = vadd.f32 0.0, %v971
      %v973 = vpop.f32.mrf.mxu0
      %v974 = vadd.f32 0.0, %v973
      %v975 = vpop.f32.mrf.mxu0
      %v976 = vpop.f32.mrf.mxu0
      %977 = vdwg.mxu0
      %978 = vmatprep.subr.bf16.mxu0 0
      %979 = vmatpush1.bf16.msra.mxu0 0
      %980 = vmatprep.subr.bf16.mxu0 0
      %981 = vmatpush1.bf16.msra.mxu0 0
      %982 = vmatprep.subr.bf16.mxu0 0
      %983 = vmatpush1.bf16.msra.mxu0 0
      %984 = vmatprep.subr.bf16.mxu0 0
      %985 = vmatpush1.bf16.msra.mxu0 0
      %986 = vmatprep.subr.bf16.mxu0 0
      %987 = vmatpush1.bf16.msra.mxu0 0
      %988 = vmatprep.subr.bf16.mxu0 0
      %989 = vmatpush1.bf16.msra.mxu0 0
      %990 = vmatprep.subr.bf16.mxu0 0
      %991 = vmatpush1.bf16.msra.mxu0 0
      %992 = vmatprep.subr.bf16.mxu0 0
      %993 = vmatpush1.bf16.msra.mxu0 %v935
      %994 = vmatprep.subr.bf16.mxu0 0
      %995 = vmatpush2.bf16.msra.mxu0 0
      %996 = vmatprep.subr.bf16.mxu0 0
      %997 = vmatpush2.bf16.msra.mxu0 0
      %998 = vmatprep.subr.bf16.mxu0 0
      %999 = vmatpush2.bf16.msra.mxu0 0
      %1000 = vmatprep.subr.bf16.mxu0 0
      %1001 = vmatpush2.bf16.msra.mxu0 0
      %1002 = vmatprep.subr.bf16.mxu0 0
      %1003 = vmatpush2.bf16.msra.mxu0 0
      %1004 = vmatprep.subr.bf16.mxu0 0
      %1005 = vmatpush2.bf16.msra.mxu0 0
      %1006 = vmatprep.subr.bf16.mxu0 0
      %1007 = vmatpush2.bf16.msra.mxu0 0
      %1008 = vmatprep.subr.bf16.mxu0 0
      %1009 = vmatpush2.bf16.msra.mxu0 0
      %1010 = vmatprep.mubr.bf16.mxu0 0
      %1011 = vmatmul.mubr.bf16.gmra.mxu0 %v926
      %v1012 = vpop.f32.mrf.mxu0
      %v1013 = vadd.f32 0.0, %v1012
      %v1014 = vpop.f32.mrf.mxu0
      %v1015 = vpop.f32.mrf.mxu0
      %v1016 = vpop.f32.mrf.mxu0
      %1017 = vdwg.mxu0
      %v1018 = vadd.f32 %v913, %v972
      %v1019 = vadd.f32 %v914, %v974
      %v1020 = vadd.f32 %v915, %v1013
      %v1021 = vadd.f32 %v1018, %v609
      %v1022 = vadd.f32 %v1019, %v609
      %v1023 = vadd.f32 %v1020, %v609
      %v1024 = vpack.c.bf16 %v1021, %v1021
      %v1025 = vpack.c.bf16 %v1022, %v1022
      %v1026 = vpack.c.bf16 %v1023, %v1023
      %v1030 = vcombine.low %v1024, %v1025
      %v1032 = vunpack.c.l.s4 1983009808
      %v1033 = vunpack.c.0.s8 %v1032
      %v1034 = vlaneseq
      %v1035 = vshrl.u32 %v1034, 7
      %v1036 = vsub.s32 %v1033, %v1035
      %v1037 = vrot.slane %v1030, %v1036
      %v1039 = vunpack.c.l.s4 1983009808
      %v1040 = vunpack.c.0.s8 %v1039
      %v1041 = vlaneseq
      %v1042 = vshrl.u32 %v1041, 7
      %v1043 = vsub.s32 %v1040, %v1042
      %v1044 = vrot.slane %v1026, %v1043
      %v1045 = vcombine.low %v1037, %v1044
      %s1047 = scalar_lea.vmem %s170, 6
      %1048 = vst.msk [vmem:[%s1047] sm:$0x3f] %vm641, %v1045
      %v1050 = vsel %vm208, %v183, 0
      %1052 = vmatprep.subr.bf16.mxu0 0
      %1053 = vmatpush1.bf16.msra.mxu0 0
      %1054 = vmatprep.subr.bf16.mxu0 0
      %1055 = vmatpush1.bf16.msra.mxu0 0
      %1056 = vmatprep.subr.bf16.mxu0 0
      %1057 = vmatpush1.bf16.msra.mxu0 0
      %1058 = vmatprep.subr.bf16.mxu0 0
      %1059 = vmatpush1.bf16.msra.mxu0 0
      %1060 = vmatprep.subr.bf16.mxu0 0
      %1061 = vmatpush1.bf16.msra.mxu0 0
      %1062 = vmatprep.subr.bf16.mxu0 0
      %1063 = vmatpush1.bf16.msra.mxu0 0
      %1064 = vmatprep.subr.bf16.mxu0 0
      %1065 = vmatpush1.bf16.msra.mxu0 0
      %1066 = vmatprep.subr.bf16.mxu0 %v517
      %1067 = vmatpush1.bf16.msra.mxu0 %v514
      %1068 = vmatprep.subr.bf16.mxu0 0
      %1069 = vmatpush2.bf16.msra.mxu0 0
      %1070 = vmatprep.subr.bf16.mxu0 0
      %1071 = vmatpush2.bf16.msra.mxu0 0
      %1072 = vmatprep.subr.bf16.mxu0 0
      %1073 = vmatpush2.bf16.msra.mxu0 0
      %1074 = vmatprep.subr.bf16.mxu0 0
      %1075 = vmatpush2.bf16.msra.mxu0 0
      %1076 = vmatprep.subr.bf16.mxu0 0
      %1077 = vmatpush2.bf16.msra.mxu0 0
      %1078 = vmatprep.subr.bf16.mxu0 0
      %1079 = vmatpush2.bf16.msra.mxu0 0
      %1080 = vmatprep.subr.bf16.mxu0 0
      %1081 = vmatpush2.bf16.msra.mxu0 0
      %1082 = vmatprep.subr.bf16.mxu0 0
      %1083 = vmatpush2.bf16.msra.mxu0 0
      %1084 = vmatprep.mubr.bf16.mxu0 0
      %1085 = vmatmul.mubr.bf16.gmra.mxu0 %v1050
      %v1086 = vpop.f32.mrf.mxu0
      %v1087 = vadd.f32 0.0, %v1086
      %v1088 = vpop.f32.mrf.mxu0
      %v1089 = vadd.f32 0.0, %v1088
      %v1090 = vpop.f32.mrf.mxu0
      %v1091 = vpop.f32.mrf.mxu0
      %1092 = vdwg.mxu0
      %1093 = vmatprep.subr.bf16.mxu0 0
      %1094 = vmatpush1.bf16.msra.mxu0 0
      %1095 = vmatprep.subr.bf16.mxu0 0
      %1096 = vmatpush1.bf16.msra.mxu0 0
      %1097 = vmatprep.subr.bf16.mxu0 0
      %1098 = vmatpush1.bf16.msra.mxu0 0
      %1099 = vmatprep.subr.bf16.mxu0 0
      %1100 = vmatpush1.bf16.msra.mxu0 0
      %1101 = vmatprep.subr.bf16.mxu0 0
      %1102 = vmatpush1.bf16.msra.mxu0 0
      %1103 = vmatprep.subr.bf16.mxu0 0
      %1104 = vmatpush1.bf16.msra.mxu0 0
      %1105 = vmatprep.subr.bf16.mxu0 0
      %1106 = vmatpush1.bf16.msra.mxu0 0
      %1107 = vmatprep.subr.bf16.mxu0 0
      %1108 = vmatpush1.bf16.msra.mxu0 %v520
      %1109 = vmatprep.subr.bf16.mxu0 0
      %1110 = vmatpush2.bf16.msra.mxu0 0
      %1111 = vmatprep.subr.bf16.mxu0 0
      %1112 = vmatpush2.bf16.msra.mxu0 0
      %1113 = vmatprep.subr.bf16.mxu0 0
      %1114 = vmatpush2.bf16.msra.mxu0 0
      %1115 = vmatprep.subr.bf16.mxu0 0
      %1116 = vmatpush2.bf16.msra.mxu0 0
      %1117 = vmatprep.subr.bf16.mxu0 0
      %1118 = vmatpush2.bf16.msra.mxu0 0
      %1119 = vmatprep.subr.bf16.mxu0 0
      %1120 = vmatpush2.bf16.msra.mxu0 0
      %1121 = vmatprep.subr.bf16.mxu0 0
      %1122 = vmatpush2.bf16.msra.mxu0 0
      %1123 = vmatprep.subr.bf16.mxu0 0
      %1124 = vmatpush2.bf16.msra.mxu0 0
      %1125 = vmatprep.mubr.bf16.mxu0 0
      %1126 = vmatmul.mubr.bf16.gmra.mxu0 %v1050
      %v1127 = vpop.f32.mrf.mxu0
      %v1128 = vadd.f32 0.0, %v1127
      %v1129 = vpop.f32.mrf.mxu0
      %v1130 = vpop.f32.mrf.mxu0
      %v1131 = vpop.f32.mrf.mxu0
      %1132 = vdwg.mxu0
      %v1134 = vsel %vm208, %v182, 0
      %1136 = vmatprep.subr.bf16.mxu0 0
      %1137 = vmatpush1.bf16.msra.mxu0 0
      %1138 = vmatprep.subr.bf16.mxu0 0
      %1139 = vmatpush1.bf16.msra.mxu0 0
      %1140 = vmatprep.subr.bf16.mxu0 0
      %1141 = vmatpush1.bf16.msra.mxu0 0
      %1142 = vmatprep.subr.bf16.mxu0 0
      %1143 = vmatpush1.bf16.msra.mxu0 0
      %1144 = vmatprep.subr.bf16.mxu0 0
      %1145 = vmatpush1.bf16.msra.mxu0 0
      %1146 = vmatprep.subr.bf16.mxu0 0
      %1147 = vmatpush1.bf16.msra.mxu0 0
      %1148 = vmatprep.subr.bf16.mxu0 0
      %1149 = vmatpush1.bf16.msra.mxu0 0
      %1150 = vmatprep.subr.bf16.mxu0 %v412
      %1151 = vmatpush1.bf16.msra.mxu0 %v409
      %1152 = vmatprep.subr.bf16.mxu0 0
      %1153 = vmatpush2.bf16.msra.mxu0 0
      %1154 = vmatprep.subr.bf16.mxu0 0
      %1155 = vmatpush2.bf16.msra.mxu0 0
      %1156 = vmatprep.subr.bf16.mxu0 0
      %1157 = vmatpush2.bf16.msra.mxu0 0
      %1158 = vmatprep.subr.bf16.mxu0 0
      %1159 = vmatpush2.bf16.msra.mxu0 0
      %1160 = vmatprep.subr.bf16.mxu0 0
      %1161 = vmatpush2.bf16.msra.mxu0 0
      %1162 = vmatprep.subr.bf16.mxu0 0
      %1163 = vmatpush2.bf16.msra.mxu0 0
      %1164 = vmatprep.subr.bf16.mxu0 0
      %1165 = vmatpush2.bf16.msra.mxu0 0
      %1166 = vmatprep.subr.bf16.mxu0 0
      %1167 = vmatpush2.bf16.msra.mxu0 0
      %1168 = vmatprep.mubr.bf16.mxu0 0
      %1169 = vmatmul.mubr.bf16.gmra.mxu0 %v1134
      %v1170 = vpop.f32.mrf.mxu0
      %v1171 = vadd.f32 %v1087, %v1170
      %v1172 = vpop.f32.mrf.mxu0
      %v1173 = vadd.f32 %v1089, %v1172
      %v1174 = vpop.f32.mrf.mxu0
      %v1175 = vpop.f32.mrf.mxu0
      %1176 = vdwg.mxu0
      %1177 = vmatprep.subr.bf16.mxu0 0
      %1178 = vmatpush1.bf16.msra.mxu0 0
      %1179 = vmatprep.subr.bf16.mxu0 0
      %1180 = vmatpush1.bf16.msra.mxu0 0
      %1181 = vmatprep.subr.bf16.mxu0 0
      %1182 = vmatpush1.bf16.msra.mxu0 0
      %1183 = vmatprep.subr.bf16.mxu0 0
      %1184 = vmatpush1.bf16.msra.mxu0 0
      %1185 = vmatprep.subr.bf16.mxu0 0
      %1186 = vmatpush1.bf16.msra.mxu0 0
      %1187 = vmatprep.subr.bf16.mxu0 0
      %1188 = vmatpush1.bf16.msra.mxu0 0
      %1189 = vmatprep.subr.bf16.mxu0 0
      %1190 = vmatpush1.bf16.msra.mxu0 0
      %1191 = vmatprep.subr.bf16.mxu0 0
      %1192 = vmatpush1.bf16.msra.mxu0 %v415
      %1193 = vmatprep.subr.bf16.mxu0 0
      %1194 = vmatpush2.bf16.msra.mxu0 0
      %1195 = vmatprep.subr.bf16.mxu0 0
      %1196 = vmatpush2.bf16.msra.mxu0 0
      %1197 = vmatprep.subr.bf16.mxu0 0
      %1198 = vmatpush2.bf16.msra.mxu0 0
      %1199 = vmatprep.subr.bf16.mxu0 0
      %1200 = vmatpush2.bf16.msra.mxu0 0
      %1201 = vmatprep.subr.bf16.mxu0 0
      %1202 = vmatpush2.bf16.msra.mxu0 0
      %1203 = vmatprep.subr.bf16.mxu0 0
      %1204 = vmatpush2.bf16.msra.mxu0 0
      %1205 = vmatprep.subr.bf16.mxu0 0
      %1206 = vmatpush2.bf16.msra.mxu0 0
      %1207 = vmatprep.subr.bf16.mxu0 0
      %1208 = vmatpush2.bf16.msra.mxu0 0
      %1209 = vmatprep.mubr.bf16.mxu0 0
      %1210 = vmatmul.mubr.bf16.gmra.mxu0 %v1134
      %v1211 = vpop.f32.mrf.mxu0
      %v1212 = vadd.f32 %v1128, %v1211
      %v1213 = vpop.f32.mrf.mxu0
      %v1214 = vpop.f32.mrf.mxu0
      %v1215 = vpop.f32.mrf.mxu0
      %1216 = vdwg.mxu0
      %1217 = vrot.lane.b32.xlu0 %v196, 92
      %v1218 = vpop.permute.xlu0 %1217
      %1219 = vrot.lane.b32.xlu0 %v197, 92
      %v1220 = vpop.permute.xlu0 %1219
      %1221 = vrot.lane.b32.xlu0 %v198, 92
      %v1222 = vpop.permute.xlu0 %1221
      %vm1223 = vcmask 752640
      %v1224 = vsel %vm1223, %v1218, %v1220
      %v1225 = vsel %vm1223, %v1220, %v1222
      %v1227 = vsel %vm208, %v184, 0
      %v1230 = vsel %vm212, %v1224, 0
      %v1233 = vsel %vm212, %v1225, 0
      %v1236 = vsel %vm212, %v1222, 0
      %1238 = vmatprep.subr.bf16.mxu0 0
      %1239 = vmatpush1.bf16.msra.mxu0 0
      %1240 = vmatprep.subr.bf16.mxu0 0
      %1241 = vmatpush1.bf16.msra.mxu0 0
      %1242 = vmatprep.subr.bf16.mxu0 0
      %1243 = vmatpush1.bf16.msra.mxu0 0
      %1244 = vmatprep.subr.bf16.mxu0 0
      %1245 = vmatpush1.bf16.msra.mxu0 0
      %1246 = vmatprep.subr.bf16.mxu0 0
      %1247 = vmatpush1.bf16.msra.mxu0 0
      %1248 = vmatprep.subr.bf16.mxu0 0
      %1249 = vmatpush1.bf16.msra.mxu0 0
      %1250 = vmatprep.subr.bf16.mxu0 0
      %1251 = vmatpush1.bf16.msra.mxu0 0
      %1252 = vmatprep.subr.bf16.mxu0 %v1233
      %1253 = vmatpush1.bf16.msra.mxu0 %v1230
      %1254 = vmatprep.subr.bf16.mxu0 0
      %1255 = vmatpush2.bf16.msra.mxu0 0
      %1256 = vmatprep.subr.bf16.mxu0 0
      %1257 = vmatpush2.bf16.msra.mxu0 0
      %1258 = vmatprep.subr.bf16.mxu0 0
      %1259 = vmatpush2.bf16.msra.mxu0 0
      %1260 = vmatprep.subr.bf16.mxu0 0
      %1261 = vmatpush2.bf16.msra.mxu0 0
      %1262 = vmatprep.subr.bf16.mxu0 0
      %1263 = vmatpush2.bf16.msra.mxu0 0
      %1264 = vmatprep.subr.bf16.mxu0 0
      %1265 = vmatpush2.bf16.msra.mxu0 0
      %1266 = vmatprep.subr.bf16.mxu0 0
      %1267 = vmatpush2.bf16.msra.mxu0 0
      %1268 = vmatprep.subr.bf16.mxu0 0
      %1269 = vmatpush2.bf16.msra.mxu0 0
      %1270 = vmatprep.mubr.bf16.mxu0 0
      %1271 = vmatmul.mubr.bf16.gmra.mxu0 %v1227
      %v1272 = vpop.f32.mrf.mxu0
      %v1273 = vadd.f32 0.0, %v1272
      %v1274 = vpop.f32.mrf.mxu0
      %v1275 = vadd.f32 0.0, %v1274
      %v1276 = vpop.f32.mrf.mxu0
      %v1277 = vpop.f32.mrf.mxu0
      %1278 = vdwg.mxu0
      %1279 = vmatprep.subr.bf16.mxu0 0
      %1280 = vmatpush1.bf16.msra.mxu0 0
      %1281 = vmatprep.subr.bf16.mxu0 0
      %1282 = vmatpush1.bf16.msra.mxu0 0
      %1283 = vmatprep.subr.bf16.mxu0 0
      %1284 = vmatpush1.bf16.msra.mxu0 0
      %1285 = vmatprep.subr.bf16.mxu0 0
      %1286 = vmatpush1.bf16.msra.mxu0 0
      %1287 = vmatprep.subr.bf16.mxu0 0
      %1288 = vmatpush1.bf16.msra.mxu0 0
      %1289 = vmatprep.subr.bf16.mxu0 0
      %1290 = vmatpush1.bf16.msra.mxu0 0
      %1291 = vmatprep.subr.bf16.mxu0 0
      %1292 = vmatpush1.bf16.msra.mxu0 0
      %1293 = vmatprep.subr.bf16.mxu0 0
      %1294 = vmatpush1.bf16.msra.mxu0 %v1236
      %1295 = vmatprep.subr.bf16.mxu0 0
      %1296 = vmatpush2.bf16.msra.mxu0 0
      %1297 = vmatprep.subr.bf16.mxu0 0
      %1298 = vmatpush2.bf16.msra.mxu0 0
      %1299 = vmatprep.subr.bf16.mxu0 0
      %1300 = vmatpush2.bf16.msra.mxu0 0
      %1301 = vmatprep.subr.bf16.mxu0 0
      %1302 = vmatpush2.bf16.msra.mxu0 0
      %1303 = vmatprep.subr.bf16.mxu0 0
      %1304 = vmatpush2.bf16.msra.mxu0 0
      %1305 = vmatprep.subr.bf16.mxu0 0
      %1306 = vmatpush2.bf16.msra.mxu0 0
      %1307 = vmatprep.subr.bf16.mxu0 0
      %1308 = vmatpush2.bf16.msra.mxu0 0
      %1309 = vmatprep.subr.bf16.mxu0 0
      %1310 = vmatpush2.bf16.msra.mxu0 0
      %1311 = vmatprep.mubr.bf16.mxu0 0
      %1312 = vmatmul.mubr.bf16.gmra.mxu0 %v1227
      %v1313 = vpop.f32.mrf.mxu0
      %v1314 = vadd.f32 0.0, %v1313
      %v1315 = vpop.f32.mrf.mxu0
      %v1316 = vpop.f32.mrf.mxu0
      %v1317 = vpop.f32.mrf.mxu0
      %1318 = vdwg.mxu0
      %v1319 = vadd.f32 %v1171, %v1273
      %v1320 = vadd.f32 %v1173, %v1275
      %v1321 = vadd.f32 %v1212, %v1314
      %1322 = vrot.lane.b32.xlu0 %v196, 91
      %v1323 = vpop.permute.xlu0 %1322
      %1324 = vrot.lane.b32.xlu0 %v197, 91
      %v1325 = vpop.permute.xlu0 %1324
      %1326 = vrot.lane.b32.xlu0 %v198, 91
      %v1327 = vpop.permute.xlu0 %1326
      %vm1328 = vcmask 744448
      %v1329 = vsel %vm1328, %v1323, %v1325
      %v1330 = vsel %vm1328, %v1325, %v1327
      %v1332 = vsel %vm208, %v185, 0
      %v1335 = vsel %vm212, %v1329, 0
      %v1338 = vsel %vm212, %v1330, 0
      %v1341 = vsel %vm212, %v1327, 0
      %1343 = vmatprep.subr.bf16.mxu0 0
      %1344 = vmatpush1.bf16.msra.mxu0 0
      %1345 = vmatprep.subr.bf16.mxu0 0
      %1346 = vmatpush1.bf16.msra.mxu0 0
      %1347 = vmatprep.subr.bf16.mxu0 0
      %1348 = vmatpush1.bf16.msra.mxu0 0
      %1349 = vmatprep.subr.bf16.mxu0 0
      %1350 = vmatpush1.bf16.msra.mxu0 0
      %1351 = vmatprep.subr.bf16.mxu0 0
      %1352 = vmatpush1.bf16.msra.mxu0 0
      %1353 = vmatprep.subr.bf16.mxu0 0
      %1354 = vmatpush1.bf16.msra.mxu0 0
      %1355 = vmatprep.subr.bf16.mxu0 0
      %1356 = vmatpush1.bf16.msra.mxu0 0
      %1357 = vmatprep.subr.bf16.mxu0 %v1338
      %1358 = vmatpush1.bf16.msra.mxu0 %v1335
      %1359 = vmatprep.subr.bf16.mxu0 0
      %1360 = vmatpush2.bf16.msra.mxu0 0
      %1361 = vmatprep.subr.bf16.mxu0 0
      %1362 = vmatpush2.bf16.msra.mxu0 0
      %1363 = vmatprep.subr.bf16.mxu0 0
      %1364 = vmatpush2.bf16.msra.mxu0 0
      %1365 = vmatprep.subr.bf16.mxu0 0
      %1366 = vmatpush2.bf16.msra.mxu0 0
      %1367 = vmatprep.subr.bf16.mxu0 0
      %1368 = vmatpush2.bf16.msra.mxu0 0
      %1369 = vmatprep.subr.bf16.mxu0 0
      %1370 = vmatpush2.bf16.msra.mxu0 0
      %1371 = vmatprep.subr.bf16.mxu0 0
      %1372 = vmatpush2.bf16.msra.mxu0 0
      %1373 = vmatprep.subr.bf16.mxu0 0
      %1374 = vmatpush2.bf16.msra.mxu0 0
      %1375 = vmatprep.mubr.bf16.mxu0 0
      %1376 = vmatmul.mubr.bf16.gmra.mxu0 %v1332
      %v1377 = vpop.f32.mrf.mxu0
      %v1378 = vadd.f32 0.0, %v1377
      %v1379 = vpop.f32.mrf.mxu0
      %v1380 = vadd.f32 0.0, %v1379
      %v1381 = vpop.f32.mrf.mxu0
      %v1382 = vpop.f32.mrf.mxu0
      %1383 = vdwg.mxu0
      %1384 = vmatprep.subr.bf16.mxu0 0
      %1385 = vmatpush1.bf16.msra.mxu0 0
      %1386 = vmatprep.subr.bf16.mxu0 0
      %1387 = vmatpush1.bf16.msra.mxu0 0
      %1388 = vmatprep.subr.bf16.mxu0 0
      %1389 = vmatpush1.bf16.msra.mxu0 0
      %1390 = vmatprep.subr.bf16.mxu0 0
      %1391 = vmatpush1.bf16.msra.mxu0 0
      %1392 = vmatprep.subr.bf16.mxu0 0
      %1393 = vmatpush1.bf16.msra.mxu0 0
      %1394 = vmatprep.subr.bf16.mxu0 0
      %1395 = vmatpush1.bf16.msra.mxu0 0
      %1396 = vmatprep.subr.bf16.mxu0 0
      %1397 = vmatpush1.bf16.msra.mxu0 0
      %1398 = vmatprep.subr.bf16.mxu0 0
      %1399 = vmatpush1.bf16.msra.mxu0 %v1341
      %1400 = vmatprep.subr.bf16.mxu0 0
      %1401 = vmatpush2.bf16.msra.mxu0 0
      %1402 = vmatprep.subr.bf16.mxu0 0
      %1403 = vmatpush2.bf16.msra.mxu0 0
      %1404 = vmatprep.subr.bf16.mxu0 0
      %1405 = vmatpush2.bf16.msra.mxu0 0
      %1406 = vmatprep.subr.bf16.mxu0 0
      %1407 = vmatpush2.bf16.msra.mxu0 0
      %1408 = vmatprep.subr.bf16.mxu0 0
      %1409 = vmatpush2.bf16.msra.mxu0 0
      %1410 = vmatprep.subr.bf16.mxu0 0
      %1411 = vmatpush2.bf16.msra.mxu0 0
      %1412 = vmatprep.subr.bf16.mxu0 0
      %1413 = vmatpush2.bf16.msra.mxu0 0
      %1414 = vmatprep.subr.bf16.mxu0 0
      %1415 = vmatpush2.bf16.msra.mxu0 0
      %1416 = vmatprep.mubr.bf16.mxu0 0
      %1417 = vmatmul.mubr.bf16.gmra.mxu0 %v1332
      %v1418 = vpop.f32.mrf.mxu0
      %v1419 = vadd.f32 0.0, %v1418
      %v1420 = vpop.f32.mrf.mxu0
      %v1421 = vpop.f32.mrf.mxu0
      %v1422 = vpop.f32.mrf.mxu0
      %1423 = vdwg.mxu0
      %v1424 = vadd.f32 %v1319, %v1378
      %v1425 = vadd.f32 %v1320, %v1380
      %v1426 = vadd.f32 %v1321, %v1419
      %v1427 = vadd.f32 %v1424, %v609
      %v1428 = vadd.f32 %v1425, %v609
      %v1429 = vadd.f32 %v1426, %v609
      %v1430 = vpack.c.bf16 %v1427, %v1427
      %v1431 = vpack.c.bf16 %v1428, %v1428
      %v1432 = vpack.c.bf16 %v1429, %v1429
      %v1436 = vcombine.low %v1430, %v1431
      %v1438 = vunpack.c.l.s4 1983009808
      %v1439 = vunpack.c.0.s8 %v1438
      %v1440 = vlaneseq
      %v1441 = vshrl.u32 %v1440, 7
      %v1442 = vsub.s32 %v1439, %v1441
      %v1443 = vrot.slane %v1436, %v1442
      %v1445 = vunpack.c.l.s4 1983009808
      %v1446 = vunpack.c.0.s8 %v1445
      %v1447 = vlaneseq
      %v1448 = vshrl.u32 %v1447, 7
      %v1449 = vsub.s32 %v1446, %v1448
      %v1450 = vrot.slane %v1432, %v1449
      %v1451 = vcombine.low %v1443, %v1450
      %s1453 = scalar_lea.vmem %s170, 12
      %1454 = vst.msk [vmem:[%s1453] sm:$0x3f] %vm641, %v1451
      %v1456 = vsel %vm208, %v187, 0
      %1458 = vmatprep.subr.bf16.mxu0 0
      %1459 = vmatpush1.bf16.msra.mxu0 0
      %1460 = vmatprep.subr.bf16.mxu0 0
      %1461 = vmatpush1.bf16.msra.mxu0 0
      %1462 = vmatprep.subr.bf16.mxu0 0
      %1463 = vmatpush1.bf16.msra.mxu0 0
      %1464 = vmatprep.subr.bf16.mxu0 0
      %1465 = vmatpush1.bf16.msra.mxu0 0
      %1466 = vmatprep.subr.bf16.mxu0 0
      %1467 = vmatpush1.bf16.msra.mxu0 0
      %1468 = vmatprep.subr.bf16.mxu0 0
      %1469 = vmatpush1.bf16.msra.mxu0 0
      %1470 = vmatprep.subr.bf16.mxu0 0
      %1471 = vmatpush1.bf16.msra.mxu0 0
      %1472 = vmatprep.subr.bf16.mxu0 %v932
      %1473 = vmatpush1.bf16.msra.mxu0 %v929
      %1474 = vmatprep.subr.bf16.mxu0 0
      %1475 = vmatpush2.bf16.msra.mxu0 0
      %1476 = vmatprep.subr.bf16.mxu0 0
      %1477 = vmatpush2.bf16.msra.mxu0 0
      %1478 = vmatprep.subr.bf16.mxu0 0
      %1479 = vmatpush2.bf16.msra.mxu0 0
      %1480 = vmatprep.subr.bf16.mxu0 0
      %1481 = vmatpush2.bf16.msra.mxu0 0
      %1482 = vmatprep.subr.bf16.mxu0 0
      %1483 = vmatpush2.bf16.msra.mxu0 0
      %1484 = vmatprep.subr.bf16.mxu0 0
      %1485 = vmatpush2.bf16.msra.mxu0 0
      %1486 = vmatprep.subr.bf16.mxu0 0
      %1487 = vmatpush2.bf16.msra.mxu0 0
      %1488 = vmatprep.subr.bf16.mxu0 0
      %1489 = vmatpush2.bf16.msra.mxu0 0
      %1490 = vmatprep.mubr.bf16.mxu0 0
      %1491 = vmatmul.mubr.bf16.gmra.mxu0 %v1456
      %v1492 = vpop.f32.mrf.mxu0
      %v1493 = vadd.f32 0.0, %v1492
      %v1494 = vpop.f32.mrf.mxu0
      %v1495 = vadd.f32 0.0, %v1494
      %v1496 = vpop.f32.mrf.mxu0
      %v1497 = vpop.f32.mrf.mxu0
      %1498 = vdwg.mxu0
      %1499 = vmatprep.subr.bf16.mxu0 0
      %1500 = vmatpush1.bf16.msra.mxu0 0
      %1501 = vmatprep.subr.bf16.mxu0 0
      %1502 = vmatpush1.bf16.msra.mxu0 0
      %1503 = vmatprep.subr.bf16.mxu0 0
      %1504 = vmatpush1.bf16.msra.mxu0 0
      %1505 = vmatprep.subr.bf16.mxu0 0
      %1506 = vmatpush1.bf16.msra.mxu0 0
      %1507 = vmatprep.subr.bf16.mxu0 0
      %1508 = vmatpush1.bf16.msra.mxu0 0
      %1509 = vmatprep.subr.bf16.mxu0 0
      %1510 = vmatpush1.bf16.msra.mxu0 0
      %1511 = vmatprep.subr.bf16.mxu0 0
      %1512 = vmatpush1.bf16.msra.mxu0 0
      %1513 = vmatprep.subr.bf16.mxu0 0
      %1514 = vmatpush1.bf16.msra.mxu0 %v935
      %1515 = vmatprep.subr.bf16.mxu0 0
      %1516 = vmatpush2.bf16.msra.mxu0 0
      %1517 = vmatprep.subr.bf16.mxu0 0
      %1518 = vmatpush2.bf16.msra.mxu0 0
      %1519 = vmatprep.subr.bf16.mxu0 0
      %1520 = vmatpush2.bf16.msra.mxu0 0
      %1521 = vmatprep.subr.bf16.mxu0 0
      %1522 = vmatpush2.bf16.msra.mxu0 0
      %1523 = vmatprep.subr.bf16.mxu0 0
      %1524 = vmatpush2.bf16.msra.mxu0 0
      %1525 = vmatprep.subr.bf16.mxu0 0
      %1526 = vmatpush2.bf16.msra.mxu0 0
      %1527 = vmatprep.subr.bf16.mxu0 0
      %1528 = vmatpush2.bf16.msra.mxu0 0
      %1529 = vmatprep.subr.bf16.mxu0 0
      %1530 = vmatpush2.bf16.msra.mxu0 0
      %1531 = vmatprep.mubr.bf16.mxu0 0
      %1532 = vmatmul.mubr.bf16.gmra.mxu0 %v1456
      %v1533 = vpop.f32.mrf.mxu0
      %v1534 = vadd.f32 0.0, %v1533
      %v1535 = vpop.f32.mrf.mxu0
      %v1536 = vpop.f32.mrf.mxu0
      %v1537 = vpop.f32.mrf.mxu0
      %1538 = vdwg.mxu0
      %v1540 = vsel %vm208, %v186, 0
      %1542 = vmatprep.subr.bf16.mxu0 0
      %1543 = vmatpush1.bf16.msra.mxu0 0
      %1544 = vmatprep.subr.bf16.mxu0 0
      %1545 = vmatpush1.bf16.msra.mxu0 0
      %1546 = vmatprep.subr.bf16.mxu0 0
      %1547 = vmatpush1.bf16.msra.mxu0 0
      %1548 = vmatprep.subr.bf16.mxu0 0
      %1549 = vmatpush1.bf16.msra.mxu0 0
      %1550 = vmatprep.subr.bf16.mxu0 0
      %1551 = vmatpush1.bf16.msra.mxu0 0
      %1552 = vmatprep.subr.bf16.mxu0 0
      %1553 = vmatpush1.bf16.msra.mxu0 0
      %1554 = vmatprep.subr.bf16.mxu0 0
      %1555 = vmatpush1.bf16.msra.mxu0 0
      %1556 = vmatprep.subr.bf16.mxu0 %v517
      %1557 = vmatpush1.bf16.msra.mxu0 %v514
      %1558 = vmatprep.subr.bf16.mxu0 0
      %1559 = vmatpush2.bf16.msra.mxu0 0
      %1560 = vmatprep.subr.bf16.mxu0 0
      %1561 = vmatpush2.bf16.msra.mxu0 0
      %1562 = vmatprep.subr.bf16.mxu0 0
      %1563 = vmatpush2.bf16.msra.mxu0 0
      %1564 = vmatprep.subr.bf16.mxu0 0
      %1565 = vmatpush2.bf16.msra.mxu0 0
      %1566 = vmatprep.subr.bf16.mxu0 0
      %1567 = vmatpush2.bf16.msra.mxu0 0
      %1568 = vmatprep.subr.bf16.mxu0 0
      %1569 = vmatpush2.bf16.msra.mxu0 0
      %1570 = vmatprep.subr.bf16.mxu0 0
      %1571 = vmatpush2.bf16.msra.mxu0 0
      %1572 = vmatprep.subr.bf16.mxu0 0
      %1573 = vmatpush2.bf16.msra.mxu0 0
      %1574 = vmatprep.mubr.bf16.mxu0 0
      %1575 = vmatmul.mubr.bf16.gmra.mxu0 %v1540
      %v1576 = vpop.f32.mrf.mxu0
      %v1577 = vadd.f32 %v1493, %v1576
      %v1578 = vpop.f32.mrf.mxu0
      %v1579 = vadd.f32 %v1495, %v1578
      %v1580 = vpop.f32.mrf.mxu0
      %v1581 = vpop.f32.mrf.mxu0
      %1582 = vdwg.mxu0
      %1583 = vmatprep.subr.bf16.mxu0 0
      %1584 = vmatpush1.bf16.msra.mxu0 0
      %1585 = vmatprep.subr.bf16.mxu0 0
      %1586 = vmatpush1.bf16.msra.mxu0 0
      %1587 = vmatprep.subr.bf16.mxu0 0
      %1588 = vmatpush1.bf16.msra.mxu0 0
      %1589 = vmatprep.subr.bf16.mxu0 0
      %1590 = vmatpush1.bf16.msra.mxu0 0
      %1591 = vmatprep.subr.bf16.mxu0 0
      %1592 = vmatpush1.bf16.msra.mxu0 0
      %1593 = vmatprep.subr.bf16.mxu0 0
      %1594 = vmatpush1.bf16.msra.mxu0 0
      %1595 = vmatprep.subr.bf16.mxu0 0
      %1596 = vmatpush1.bf16.msra.mxu0 0
      %1597 = vmatprep.subr.bf16.mxu0 0
      %1598 = vmatpush1.bf16.msra.mxu0 %v520
      %1599 = vmatprep.subr.bf16.mxu0 0
      %1600 = vmatpush2.bf16.msra.mxu0 0
      %1601 = vmatprep.subr.bf16.mxu0 0
      %1602 = vmatpush2.bf16.msra.mxu0 0
      %1603 = vmatprep.subr.bf16.mxu0 0
      %1604 = vmatpush2.bf16.msra.mxu0 0
      %1605 = vmatprep.subr.bf16.mxu0 0
      %1606 = vmatpush2.bf16.msra.mxu0 0
      %1607 = vmatprep.subr.bf16.mxu0 0
      %1608 = vmatpush2.bf16.msra.mxu0 0
      %1609 = vmatprep.subr.bf16.mxu0 0
      %1610 = vmatpush2.bf16.msra.mxu0 0
      %1611 = vmatprep.subr.bf16.mxu0 0
      %1612 = vmatpush2.bf16.msra.mxu0 0
      %1613 = vmatprep.subr.bf16.mxu0 0
      %1614 = vmatpush2.bf16.msra.mxu0 0
      %1615 = vmatprep.mubr.bf16.mxu0 0
      %1616 = vmatmul.mubr.bf16.gmra.mxu0 %v1540
      %v1617 = vpop.f32.mrf.mxu0
      %v1618 = vadd.f32 %v1534, %v1617
      %v1619 = vpop.f32.mrf.mxu0
      %v1620 = vpop.f32.mrf.mxu0
      %v1621 = vpop.f32.mrf.mxu0
      %1622 = vdwg.mxu0
      %v1624 = vsel %vm208, %v188, 0
      %1626 = vmatprep.subr.bf16.mxu0 0
      %1627 = vmatpush1.bf16.msra.mxu0 0
      %1628 = vmatprep.subr.bf16.mxu0 0
      %1629 = vmatpush1.bf16.msra.mxu0 0
      %1630 = vmatprep.subr.bf16.mxu0 0
      %1631 = vmatpush1.bf16.msra.mxu0 0
      %1632 = vmatprep.subr.bf16.mxu0 0
      %1633 = vmatpush1.bf16.msra.mxu0 0
      %1634 = vmatprep.subr.bf16.mxu0 0
      %1635 = vmatpush1.bf16.msra.mxu0 0
      %1636 = vmatprep.subr.bf16.mxu0 0
      %1637 = vmatpush1.bf16.msra.mxu0 0
      %1638 = vmatprep.subr.bf16.mxu0 0
      %1639 = vmatpush1.bf16.msra.mxu0 0
      %1640 = vmatprep.subr.bf16.mxu0 %v1338
      %1641 = vmatpush1.bf16.msra.mxu0 %v1335
      %1642 = vmatprep.subr.bf16.mxu0 0
      %1643 = vmatpush2.bf16.msra.mxu0 0
      %1644 = vmatprep.subr.bf16.mxu0 0
      %1645 = vmatpush2.bf16.msra.mxu0 0
      %1646 = vmatprep.subr.bf16.mxu0 0
      %1647 = vmatpush2.bf16.msra.mxu0 0
      %1648 = vmatprep.subr.bf16.mxu0 0
      %1649 = vmatpush2.bf16.msra.mxu0 0
      %1650 = vmatprep.subr.bf16.mxu0 0
      %1651 = vmatpush2.bf16.msra.mxu0 0
      %1652 = vmatprep.subr.bf16.mxu0 0
      %1653 = vmatpush2.bf16.msra.mxu0 0
      %1654 = vmatprep.subr.bf16.mxu0 0
      %1655 = vmatpush2.bf16.msra.mxu0 0
      %1656 = vmatprep.subr.bf16.mxu0 0
      %1657 = vmatpush2.bf16.msra.mxu0 0
      %1658 = vmatprep.mubr.bf16.mxu0 0
      %1659 = vmatmul.mubr.bf16.gmra.mxu0 %v1624
      %v1660 = vpop.f32.mrf.mxu0
      %v1661 = vadd.f32 0.0, %v1660
      %v1662 = vpop.f32.mrf.mxu0
      %v1663 = vadd.f32 0.0, %v1662
      %v1664 = vpop.f32.mrf.mxu0
      %v1665 = vpop.f32.mrf.mxu0
      %1666 = vdwg.mxu0
      %1667 = vmatprep.subr.bf16.mxu0 0
      %1668 = vmatpush1.bf16.msra.mxu0 0
      %1669 = vmatprep.subr.bf16.mxu0 0
      %1670 = vmatpush1.bf16.msra.mxu0 0
      %1671 = vmatprep.subr.bf16.mxu0 0
      %1672 = vmatpush1.bf16.msra.mxu0 0
      %1673 = vmatprep.subr.bf16.mxu0 0
      %1674 = vmatpush1.bf16.msra.mxu0 0
      %1675 = vmatprep.subr.bf16.mxu0 0
      %1676 = vmatpush1.bf16.msra.mxu0 0
      %1677 = vmatprep.subr.bf16.mxu0 0
      %1678 = vmatpush1.bf16.msra.mxu0 0
      %1679 = vmatprep.subr.bf16.mxu0 0
      %1680 = vmatpush1.bf16.msra.mxu0 0
      %1681 = vmatprep.subr.bf16.mxu0 0
      %1682 = vmatpush1.bf16.msra.mxu0 %v1341
      %1683 = vmatprep.subr.bf16.mxu0 0
      %1684 = vmatpush2.bf16.msra.mxu0 0
      %1685 = vmatprep.subr.bf16.mxu0 0
      %1686 = vmatpush2.bf16.msra.mxu0 0
      %1687 = vmatprep.subr.bf16.mxu0 0
      %1688 = vmatpush2.bf16.msra.mxu0 0
      %1689 = vmatprep.subr.bf16.mxu0 0
      %1690 = vmatpush2.bf16.msra.mxu0 0
      %1691 = vmatprep.subr.bf16.mxu0 0
      %1692 = vmatpush2.bf16.msra.mxu0 0
      %1693 = vmatprep.subr.bf16.mxu0 0
      %1694 = vmatpush2.bf16.msra.mxu0 0
      %1695 = vmatprep.subr.bf16.mxu0 0
      %1696 = vmatpush2.bf16.msra.mxu0 0
      %1697 = vmatprep.subr.bf16.mxu0 0
      %1698 = vmatpush2.bf16.msra.mxu0 0
      %1699 = vmatprep.mubr.bf16.mxu0 0
      %1700 = vmatmul.mubr.bf16.gmra.mxu0 %v1624
      %v1701 = vpop.f32.mrf.mxu0
      %v1702 = vadd.f32 0.0, %v1701
      %v1703 = vpop.f32.mrf.mxu0
      %v1704 = vpop.f32.mrf.mxu0
      %v1705 = vpop.f32.mrf.mxu0
      %1706 = vdwg.mxu0
      %v1707 = vadd.f32 %v1577, %v1661
      %v1708 = vadd.f32 %v1579, %v1663
      %v1709 = vadd.f32 %v1618, %v1702
      %1710 = vrot.lane.b32.xlu0 %v196, 90
      %v1711 = vpop.permute.xlu0 %1710
      %1712 = vrot.lane.b32.xlu0 %v197, 90
      %v1713 = vpop.permute.xlu0 %1712
      %1714 = vrot.lane.b32.xlu0 %v198, 90
      %v1715 = vpop.permute.xlu0 %1714
      %vm1716 = vcmask 736256
      %v1717 = vsel %vm1716, %v1711, %v1713
      %v1718 = vsel %vm1716, %v1713, %v1715
      %v1720 = vsel %vm208, %v189, 0
      %v1723 = vsel %vm212, %v1717, 0
      %v1726 = vsel %vm212, %v1718, 0
      %v1729 = vsel %vm212, %v1715, 0
      %1731 = vmatprep.subr.bf16.mxu0 0
      %1732 = vmatpush1.bf16.msra.mxu0 0
      %1733 = vmatprep.subr.bf16.mxu0 0
      %1734 = vmatpush1.bf16.msra.mxu0 0
      %1735 = vmatprep.subr.bf16.mxu0 0
      %1736 = vmatpush1.bf16.msra.mxu0 0
      %1737 = vmatprep.subr.bf16.mxu0 0
      %1738 = vmatpush1.bf16.msra.mxu0 0
      %1739 = vmatprep.subr.bf16.mxu0 0
      %1740 = vmatpush1.bf16.msra.mxu0 0
      %1741 = vmatprep.subr.bf16.mxu0 0
      %1742 = vmatpush1.bf16.msra.mxu0 0
      %1743 = vmatprep.subr.bf16.mxu0 0
      %1744 = vmatpush1.bf16.msra.mxu0 0
      %1745 = vmatprep.subr.bf16.mxu0 %v1726
      %1746 = vmatpush1.bf16.msra.mxu0 %v1723
      %1747 = vmatprep.subr.bf16.mxu0 0
      %1748 = vmatpush2.bf16.msra.mxu0 0
      %1749 = vmatprep.subr.bf16.mxu0 0
      %1750 = vmatpush2.bf16.msra.mxu0 0
      %1751 = vmatprep.subr.bf16.mxu0 0
      %1752 = vmatpush2.bf16.msra.mxu0 0
      %1753 = vmatprep.subr.bf16.mxu0 0
      %1754 = vmatpush2.bf16.msra.mxu0 0
      %1755 = vmatprep.subr.bf16.mxu0 0
      %1756 = vmatpush2.bf16.msra.mxu0 0
      %1757 = vmatprep.subr.bf16.mxu0 0
      %1758 = vmatpush2.bf16.msra.mxu0 0
      %1759 = vmatprep.subr.bf16.mxu0 0
      %1760 = vmatpush2.bf16.msra.mxu0 0
      %1761 = vmatprep.subr.bf16.mxu0 0
      %1762 = vmatpush2.bf16.msra.mxu0 0
      %1763 = vmatprep.mubr.bf16.mxu0 0
      %1764 = vmatmul.mubr.bf16.gmra.mxu0 %v1720
      %v1765 = vpop.f32.mrf.mxu0
      %v1766 = vadd.f32 0.0, %v1765
      %v1767 = vpop.f32.mrf.mxu0
      %v1768 = vadd.f32 0.0, %v1767
      %v1769 = vpop.f32.mrf.mxu0
      %v1770 = vpop.f32.mrf.mxu0
      %1771 = vdwg.mxu0
      %1772 = vmatprep.subr.bf16.mxu0 0
      %1773 = vmatpush1.bf16.msra.mxu0 0
      %1774 = vmatprep.subr.bf16.mxu0 0
      %1775 = vmatpush1.bf16.msra.mxu0 0
      %1776 = vmatprep.subr.bf16.mxu0 0
      %1777 = vmatpush1.bf16.msra.mxu0 0
      %1778 = vmatprep.subr.bf16.mxu0 0
      %1779 = vmatpush1.bf16.msra.mxu0 0
      %1780 = vmatprep.subr.bf16.mxu0 0
      %1781 = vmatpush1.bf16.msra.mxu0 0
      %1782 = vmatprep.subr.bf16.mxu0 0
      %1783 = vmatpush1.bf16.msra.mxu0 0
      %1784 = vmatprep.subr.bf16.mxu0 0
      %1785 = vmatpush1.bf16.msra.mxu0 0
      %1786 = vmatprep.subr.bf16.mxu0 0
      %1787 = vmatpush1.bf16.msra.mxu0 %v1729
      %1788 = vmatprep.subr.bf16.mxu0 0
      %1789 = vmatpush2.bf16.msra.mxu0 0
      %1790 = vmatprep.subr.bf16.mxu0 0
      %1791 = vmatpush2.bf16.msra.mxu0 0
      %1792 = vmatprep.subr.bf16.mxu0 0
      %1793 = vmatpush2.bf16.msra.mxu0 0
      %1794 = vmatprep.subr.bf16.mxu0 0
      %1795 = vmatpush2.bf16.msra.mxu0 0
      %1796 = vmatprep.subr.bf16.mxu0 0
      %1797 = vmatpush2.bf16.msra.mxu0 0
      %1798 = vmatprep.subr.bf16.mxu0 0
      %1799 = vmatpush2.bf16.msra.mxu0 0
      %1800 = vmatprep.subr.bf16.mxu0 0
      %1801 = vmatpush2.bf16.msra.mxu0 0
      %1802 = vmatprep.subr.bf16.mxu0 0
      %1803 = vmatpush2.bf16.msra.mxu0 0
      %1804 = vmatprep.mubr.bf16.mxu0 0
      %1805 = vmatmul.mubr.bf16.gmra.mxu0 %v1720
      %v1806 = vpop.f32.mrf.mxu0
      %v1807 = vadd.f32 0.0, %v1806
      %v1808 = vpop.f32.mrf.mxu0
      %v1809 = vpop.f32.mrf.mxu0
      %v1810 = vpop.f32.mrf.mxu0
      %1811 = vdwg.mxu0
      %v1812 = vadd.f32 %v1707, %v1766
      %v1813 = vadd.f32 %v1708, %v1768
      %v1814 = vadd.f32 %v1709, %v1807
      %v1815 = vadd.f32 %v1812, %v609
      %v1816 = vadd.f32 %v1813, %v609
      %v1817 = vadd.f32 %v1814, %v609
      %v1818 = vpack.c.bf16 %v1815, %v1815
      %v1819 = vpack.c.bf16 %v1816, %v1816
      %v1820 = vpack.c.bf16 %v1817, %v1817
      %v1824 = vcombine.low %v1818, %v1819
      %v1826 = vunpack.c.l.s4 1983009808
      %v1827 = vunpack.c.0.s8 %v1826
      %v1828 = vlaneseq
      %v1829 = vshrl.u32 %v1828, 7
      %v1830 = vsub.s32 %v1827, %v1829
      %v1831 = vrot.slane %v1824, %v1830
      %v1833 = vunpack.c.l.s4 1983009808
      %v1834 = vunpack.c.0.s8 %v1833
      %v1835 = vlaneseq
      %v1836 = vshrl.u32 %v1835, 7
      %v1837 = vsub.s32 %v1834, %v1836
      %v1838 = vrot.slane %v1820, %v1837
      %v1839 = vcombine.low %v1831, %v1838
      %s1841 = scalar_lea.vmem %s170, 18
      %1842 = vst.msk [vmem:[%s1841] sm:$0x3f] %vm641, %v1839
      %p1843 = scmp.lt.s32.totalorder %s14, 1
      %s1844 = scalar_select %p1843, %s14, 1
      %s1845 = smul.addr %s1844, 12
      %s1846 = smul.addr %s1845, 2
      %s1847 = scalar_lea.vmem %s3, %s1846
      // Predicated region
      $region33: #{_lambda_.1} parent=31 // pred_check
        %p1848 = pneg %p100
      $region34: #{_lambda_.1} parent=31 // pred_check_branch
        %1850 = sbr.rel (%p1848) target = $region36
      $region35: #{_lambda_.1} parent=31 // pred_region
        _
      $region36: #{_lambda_.1} parent=31 // pred_fallthru
        _
    $region32: #{_lambda_.1} parent=5 // pred_fallthru
      _
    %p1851 = scmp.le.s32.totalorder 2, %s9
    // Predicated region
    $region37: #{_lambda_.1} parent=5 // pred_check
      %p1852 = pneg %p1851
    $region38: #{_lambda_.1} parent=5 // pred_check_branch
      %1854 = sbr.rel (%p1852) target = $region40
    $region39: #{_lambda_.1} parent=5 // pred_region
      %s1855 = ssub.s32 %s9, 2
      // Predicated region
      $region41: #{_lambda_.1} parent=39 // pred_check
        %p1856 = pneg %p106
      $region42: #{_lambda_.1} parent=39 // pred_check_branch
        %1858 = sbr.rel (%p1856) target = $region44
      $region43: #{_lambda_.1} parent=39 // pred_region
        %p1859 = scmp.lt.s32.totalorder %s15, 1
        %s1860 = scalar_select %p1859, %s15, 1
        %s1861 = smul.addr %s1860, 12
        %s1862 = smul.addr %s1861, 2
        %s1863 = scalar_lea.vmem %s3, %s1862
      $region44: #{_lambda_.1} parent=39 // pred_fallthru
        _
    $region40: #{_lambda_.1} parent=5 // pred_fallthru
      _
  $region6: #{_lambda_.1} parent=0 // loop_footer
    %s13 = sadd.s32 1, %s9
  $region7: #{_lambda_.1} parent=0 // loop_footer_branch
    %8 = sbr.rel target = $region3
  $region8: #{_lambda_.1} parent=0 // loop_exit
    _

</llo_original>
